<compile_context>
chip_gen: v6e
topology: v6e:2x2x1
jax: 0.10.0
libtpu: 0.0.40
codegen_flags: <defaults>
</compile_context>

<pallas_src>
import functools

import jax
import jax.numpy as jnp
import numpy as np
from jax.experimental import pallas as pl
from jax.experimental.pallas import tpu as pltpu


# =====================================================================================
# Routing path (DigitCaps)
# =====================================================================================
def _routing_kernel(x_ref, xt_ref, w_ref, bcast_ref, gsum_ref, o_ref,
                    b_ref, acc_ref, cw_ref, *, num_routing, batch_total):
    I, K, N = w_ref.shape
    r = pl.program_id(0)              # routing iteration (outer, sequential)
    t = pl.program_id(1)              # batch tile (inner)
    nt = pl.num_programs(1)

    @pl.when(jnp.logical_and(r == 0, t == 0))
    def _init():
        b_ref[...] = jnp.zeros_like(b_ref)          # logits, shared across the batch
        acc_ref[...] = jnp.zeros_like(acc_ref)      # batch-mean agreement accumulator

    # Batch-invariant work, hoisted to t == 0: softmax(b_ij) and the c-scaled weight
    # cw[(i,k), n] = w[(i,k), n] * c[i, j(n)].  Folding c into the weight turns the
    # per-capsule K=8-deep einsum into one full-depth (tb, I*K) @ (I*K, N) matmul.
    @pl.when(t == 0)
    def _build_cw():
        b_ij = b_ref[...]                                             # (I, J) f32
        e = jnp.exp(b_ij - jnp.max(b_ij, axis=1, keepdims=True))
        c = e / jnp.sum(e, axis=1, keepdims=True)                     # (I, J)
        c_wide = jnp.dot(c, bcast_ref[...],
                         preferred_element_type=jnp.float32)          # (I, N)
        cw = w_ref[...] * c_wide[:, None, :]                          # (I, K, N) f32
        cw_ref[...] = cw.reshape(I * K, N).astype(jnp.bfloat16)

    x2 = x_ref[...]                                                   # (tb, I*K) bf16
    # s[b, n] = sum_i c[i, j(n)] * u_hat[i, b, n]   — one MXU matmul, f32 accumulate.
    s = jnp.dot(x2, cw_ref[...], preferred_element_type=jnp.float32)  # (tb, N) f32

    # squash along unit_size: group-sum of s^2 (f32 0/1 matmul); v = s*sqrt(m)/(1+m).
    gsum = gsum_ref[...]                                              # (N, J) f32
    mag = jnp.dot(s * s, gsum, preferred_element_type=jnp.float32)    # (tb, J)
    scale = jnp.sqrt(mag) / (1.0 + mag)                               # (tb, J)
    v = s * jnp.dot(scale, bcast_ref[...],
                    preferred_element_type=jnp.float32)               # (tb, N)

    @pl.when(r == num_routing - 1)
    def _store():
        o_ref[...] = v            # lane-dense (tb, 160) store, final iteration only

    # Agreement update without re-materializing u_hat:
    #   a[i, j] = sum_{b,u,k} x[b,(i,k)] * w[(i,k),(j,u)] * v[b,(j,u)]
    # Contract over the batch tile on the MXU first (G = x^T @ v), then a cheap
    # f32 elementwise product with w and group reductions over k and u.
    @pl.when(r < num_routing - 1)
    def _accumulate():
        G = jnp.dot(xt_ref[...], v.astype(jnp.bfloat16),
                    preferred_element_type=jnp.float32)               # (I*K, N) f32
        uv = jnp.sum(w_ref[...] * G.reshape(I, K, N), axis=1)         # (I, N) f32
        a = jnp.dot(uv, gsum, preferred_element_type=jnp.float32)     # (I, J) f32
        acc_ref[...] += a * (1.0 / batch_total)

    @pl.when(jnp.logical_and(r < num_routing - 1, t == nt - 1))
    def _commit():
        b_ref[...] += acc_ref[...]
        acc_ref[...] = jnp.zeros_like(acc_ref)


def capsule_routing_forward(x, weight, num_routing):
    """x: (B, in_unit, in_channel); weight: (1, in_channel, num_unit, unit_size, in_unit).
    Returns (B, num_unit, unit_size, 1), matching CapsuleLayer.routing()."""
    B = x.shape[0]
    _, I, J, U, K = weight.shape
    N = J * U
    IK = I * K

    # Layout glue (XLA only): lane-dense operands.
    #   x2d[b, i*K+k] = x[b, k, i]      -> (B, I*K)
    #   xT  = x2d^T                     -> (I*K, B)  (batch-contraction matmul LHS)
    #   w3[i, k, j*U+u] = weight[0, i, j, u, k]
    x2d = jnp.transpose(x, (0, 2, 1)).reshape(B, IK).astype(jnp.bfloat16)
    xT = jnp.transpose(x2d, (1, 0))
    w3 = jnp.transpose(weight[0], (0, 3, 1, 2)).reshape(I, K, N).astype(jnp.bfloat16)

    # Tiny resident 0/1 group matrices (f32): bcast expands j -> (j,u); gsum sums u.
    jj = jnp.arange(J)[:, None]
    nn = jnp.arange(N)[None, :]
    bcast = (nn // U == jj).astype(jnp.float32)                       # (J, N)
    gsum = jnp.transpose(bcast, (1, 0))                               # (N, J)

    # Batch tile: whole batch when small, otherwise a 128-multiple divisor so the
    # (8,128) block rule holds for both the (tb, IK) and (IK, tb) blocks.
    if B <= 128:
        tb = B
    else:
        tb = B
        for cand in (512, 384, 256, 128):
            if B % cand == 0:
                tb = cand
                break
    nt = B // tb

    out = pl.pallas_call(
        functools.partial(_routing_kernel, num_routing=num_routing, batch_total=B),
        grid=(num_routing, nt),
        in_specs=[pl.BlockSpec((tb, IK), lambda r, t: (t, 0)),
                  pl.BlockSpec((IK, tb), lambda r, t: (0, t)),
                  pl.BlockSpec((I, K, N), lambda r, t: (0, 0, 0)),    # weight resident
                  pl.BlockSpec((J, N), lambda r, t: (0, 0)),
                  pl.BlockSpec((N, J), lambda r, t: (0, 0))],
        out_specs=pl.BlockSpec((tb, N), lambda r, t: (t, 0)),
        out_shape=jax.ShapeDtypeStruct((B, N), jnp.float32),
        scratch_shapes=[pltpu.VMEM((I, J), jnp.float32),    # b_ij (batch-shared logits)
                        pltpu.VMEM((I, J), jnp.float32),    # agreement accumulator
                        pltpu.VMEM((IK, N), jnp.bfloat16)], # c-scaled weight (per r)
        compiler_params=pltpu.CompilerParams(
            # Routing iterations are sequential and b_ij couples all batch tiles,
            # so both grid axes must stay "arbitrary" (single-TC on v7x; the b_ij
            # coupling makes a cross-core split non-trivial).
            dimension_semantics=("arbitrary", "arbitrary"),
            vmem_limit_bytes=48 * 1024 * 1024),
    )(x2d, xT, w3, bcast, gsum)
    return out.reshape(B, J, U)[..., None]


# =====================================================================================
# No-routing path (PrimaryCapsules): fused conv-as-matmul + bias + squash(dim=num_unit)
# =====================================================================================
def _conv_squash_kernel(w_ref, x_ref, bias_ref, o_ref, *, num_unit, out_ch):
    # (num_unit*out_ch, Kc_pad) @ (Kc_pad, tm) on the MXU; weight resident, full K.
    y = jnp.dot(w_ref[...], x_ref[...], preferred_element_type=jnp.float32)
    y = y + bias_ref[...]                                             # (n_tot, tm) f32
    # squash over the num_unit row groups (row n = u*out_ch + o), entirely in f32.
    rows = [y[u * out_ch:(u + 1) * out_ch, :] for u in range(num_unit)]
    mag = rows[0] * rows[0]
    for u in range(1, num_unit):
        mag = mag + rows[u] * rows[u]                                 # (out_ch, tm)
    scale = jnp.sqrt(mag) / (1.0 + mag)                               # (out_ch, tm)
    for u in range(num_unit):
        o_ref[u * out_ch:(u + 1) * out_ch, :] = rows[u] * scale


def _im2col_cols(x, k, stride):
    """x: (B, C, H, W) -> (B, C*k*k, Ho*Wo); row index kc = c*k*k + kh*k + kw."""
    B, C, H, W = x.shape
    Ho = (H - k) // stride + 1
    Wo = (W - k) // stride + 1
    cols = []
    for kh in range(k):
        for kw in range(k):
            cols.append(x[:, :, kh:kh + stride * Ho:stride, kw:kw + stride * Wo:stride])
    cols = jnp.stack(cols, axis=2)                    # (B, C, k*k, Ho, Wo)
    return cols.reshape(B, C * k * k, Ho * Wo), Ho, Wo


def capsule_no_routing_forward(x, conv_w, conv_b):
    """x: (B, C, H, W); conv_w: (num_unit, 32, C, 9, 9); conv_b: (num_unit, 32).
    Returns (B, num_unit, 32*Ho*Wo), matching CapsuleLayer.no_routing()."""
    B, C, H, W = x.shape
    num_unit, out_ch = conv_w.shape[0], conv_w.shape[1]
    ksz, stride = conv_w.shape[-1], 2
    n_tot = num_unit * out_ch

    # TODO(synk): replace the host-side im2col with an in-kernel stride-2 row gather
    # (memory_space=pl.ANY + make_async_copy) to avoid the ~k*k/stride^2 HBM expansion.
    cols, Ho, Wo = _im2col_cols(x.astype(jnp.bfloat16), ksz, stride)   # (B, Kc, P)
    P = Ho * Wo
    Kc = C * ksz * ksz
    Kc_pad = ((Kc + 127) // 128) * 128                 # 128-aligned contraction axis

    # Fold batch into the LANE dimension: RHS is (Kc_pad, B*P) so the MXU N dim and
    # the output stores are >=128 wide instead of P, and column tiles parallelize.
    M = B * P
    rhs = jnp.transpose(cols, (1, 0, 2)).reshape(Kc, M)                # col m = b*P + p
    tm = 512 if M >= 512 else (256 if M >= 256 else 128)
    M_pad = ((M + tm - 1) // tm) * tm
    rhs = jnp.pad(rhs, ((0, Kc_pad - Kc), (0, M_pad - M)))

    w2 = conv_w.reshape(n_tot, Kc).astype(jnp.bfloat16)                # row = u*out_ch + o
    w2 = jnp.pad(w2, ((0, 0), (0, Kc_pad - Kc)))
    b2 = conv_b.reshape(n_tot, 1).astype(jnp.float32)

    out = pl.pallas_call(
        functools.partial(_conv_squash_kernel, num_unit=num_unit, out_ch=out_ch),
        grid=(M_pad // tm,),
        in_specs=[pl.BlockSpec((n_tot, Kc_pad), lambda m: (0, 0)),     # weight resident
                  pl.BlockSpec((Kc_pad, tm), lambda m: (0, m)),
                  pl.BlockSpec((n_tot, 1), lambda m: (0, 0))],
        out_specs=pl.BlockSpec((n_tot, tm), lambda m: (0, m)),
        out_shape=jax.ShapeDtypeStruct((n_tot, M_pad), jnp.float32),
        compiler_params=pltpu.CompilerParams(
            dimension_semantics=("parallel",),
            vmem_limit_bytes=48 * 1024 * 1024),
    )(w2, rhs, b2)

    # (u*out_ch+o, b*P+p) -> (B, num_unit, out_ch*P): wrapper-side layout glue only.
    out = out[:, :M].reshape(num_unit, out_ch, B, P)
    return jnp.transpose(out, (2, 0, 1, 3)).reshape(B, num_unit, out_ch * P)


# =====================================================================================
# Pure-JAX references (mirror the PyTorch code 1:1) for correctness checks.
# =====================================================================================
def _squash_ref(s, axis):
    mag_sq = jnp.sum(s * s, axis=axis, keepdims=True)
    mag = jnp.sqrt(mag_sq)
    return (mag_sq / (1.0 + mag_sq)) * (s / mag)


def routing_ref(x, weight, num_routing):
    B = x.shape[0]
    _, I, J, U, K = weight.shape
    xt = jnp.transpose(x, (0, 2, 1))                                      # (B, I, K)
    xs = jnp.broadcast_to(xt[:, :, None, :], (B, I, J, K))[..., None]     # (B, I, J, K, 1)
    Wb = jnp.broadcast_to(weight, (B, I, J, U, K))
    u_hat = jnp.matmul(Wb, xs, precision=jax.lax.Precision.HIGHEST)       # (B, I, J, U, 1)
    b_ij = jnp.zeros((1, I, J, 1), jnp.float32)
    v = None
    for _ in range(num_routing):
        c = jax.nn.softmax(b_ij, axis=2)
        c = jnp.broadcast_to(c, (B, I, J, 1))[..., None]                  # (B, I, J, 1, 1)
        s = jnp.sum(c * u_hat, axis=1, keepdims=True)                     # (B, 1, J, U, 1)
        v = _squash_ref(s, axis=3)
        v1 = jnp.broadcast_to(v, (B, I, J, U, 1))
        uv = jnp.matmul(jnp.swapaxes(u_hat, 3, 4), v1,
                        precision=jax.lax.Precision.HIGHEST)              # (B, I, J, 1, 1)
        uv = jnp.mean(jnp.squeeze(uv, axis=4), axis=0, keepdims=True)     # (1, I, J, 1)
        b_ij = b_ij + uv
    return jnp.squeeze(v, axis=1)                                         # (B, J, U, 1)


def no_routing_ref(x, conv_w, conv_b):
    B = x.shape[0]
    num_unit = conv_w.shape[0]
    outs = []
    for u in range(num_unit):
        y = jax.lax.conv_general_dilated(
            x, conv_w[u], window_strides=(2, 2), padding="VALID",
            dimension_numbers=("NCHW", "OIHW", "NCHW"),
            precision=jax.lax.Precision.HIGHEST)
        y = y + conv_b[u][None, :, None, None]
        outs.append(y)
    unit = jnp.stack(outs, axis=1)                                        # (B, num_unit, 32, Ho, Wo)
    unit = unit.reshape(B, num_unit, -1)
    return _squash_ref(unit, axis=1)


if __name__ == "__main__":
    key = jax.random.PRNGKey(0)
    k1, k2, k3, k4, k5 = jax.random.split(key, 5)

    def q(a):  # bf16-quantize inputs so the bf16-MXU kernels and the f32 references agree
        return a.astype(jnp.bfloat16).astype(jnp.float32)

    # ---------------- routing mode (DigitCaps-like), small shapes ----------------
    B, in_unit, in_channel, num_unit, unit_size, num_routing = 2, 8, 32, 10, 16, 3
    x_r = q(jax.random.normal(k1, (B, in_unit, in_channel), jnp.float32))
    weight = q(jax.random.normal(k2, (1, in_channel, num_unit, unit_size, in_unit), jnp.float32))

    v = jax.block_until_ready(capsule_routing_forward(x_r, weight, num_routing))
    v_ref = jax.block_until_ready(routing_ref(x_r, weight, num_routing))
    np.testing.assert_allclose(np.asarray(v), np.asarray(v_ref), rtol=2e-2, atol=2e-2)

    # ---------------- no-routing mode (PrimaryCapsules-like), small shapes --------
    Bc, Cc, Hc, Wc, n_units = 2, 4, 16, 16, 8
    x_c = q(jax.random.normal(k3, (Bc, Cc, Hc, Wc), jnp.float32))
    conv_w = q(0.1 * jax.random.normal(k4, (n_units, 32, Cc, 9, 9), jnp.float32))
    conv_b = 0.1 * jax.random.normal(k5, (n_units, 32), jnp.float32)

    u_out = jax.block_until_ready(capsule_no_routing_forward(x_c, conv_w, conv_b))
    u_ref = jax.block_until_ready(no_routing_ref(x_c, conv_w, conv_b))
    np.testing.assert_allclose(np.asarray(u_out), np.asarray(u_ref), rtol=2e-2, atol=2e-2)

    print("KERNEL_OK")
</pallas_src>

<mosaic_0001>
module attributes {stable_mosaic.version = 11 : i64} {
  func.func @_routing_kernel(%arg0: i32, %arg1: i32, %arg2: memref<2x256xbf16, #tpu.memory_space<vmem>>, %arg3: memref<256x2xbf16, #tpu.memory_space<vmem>>, %arg4: memref<32x8x160xbf16, #tpu.memory_space<vmem>>, %arg5: memref<10x160xf32, #tpu.memory_space<vmem>>, %arg6: memref<160x10xf32, #tpu.memory_space<vmem>>, %arg7: memref<2x160xf32, #tpu.memory_space<vmem>>, %arg8: memref<32x10xf32, #tpu.memory_space<vmem>>, %arg9: memref<32x10xf32, #tpu.memory_space<vmem>>, %arg10: memref<256x160xbf16, #tpu.memory_space<vmem>>) attributes {dimension_semantics = [#tpu.dimension_semantics<arbitrary>, #tpu.dimension_semantics<arbitrary>], iteration_bounds = array<i64: 3, 1>, scalar_prefetch = 0 : i64, scratch_operands = 3 : i64, tpu.core_type = #tpu.core_type<tc>, window_params = [{transform_indices = @transform_0, window_bounds = array<i64: 2, 256>}, {transform_indices = @transform_1, window_bounds = array<i64: 256, 2>}, {pipeline_mode = #tpu.pipeline_mode<synchronous>, transform_indices = @transform_2, window_bounds = array<i64: 32, 8, 160>}, {pipeline_mode = #tpu.pipeline_mode<synchronous>, transform_indices = @transform_3, window_bounds = array<i64: 10, 160>}, {pipeline_mode = #tpu.pipeline_mode<synchronous>, transform_indices = @transform_4, window_bounds = array<i64: 160, 10>}, {transform_indices = @transform_5, window_bounds = array<i64: 2, 160>}]} {
    %c0_i32 = arith.constant 0 : i32
    %0 = arith.cmpi eq, %arg0, %c0_i32 : i32
    %c0_i32_0 = arith.constant 0 : i32
    %1 = arith.cmpi eq, %arg1, %c0_i32_0 : i32
    %2 = arith.andi %0, %1 : i1
    %3 = arith.extui %2 : i1 to i32
    %c0_i32_1 = arith.constant 0 : i32
    %4 = arith.cmpi ne, %3, %c0_i32_1 : i32
    scf.if %4 {
      %cst_20 = arith.constant 0.000000e+00 : f32
      %32 = vector.broadcast %cst_20 : f32 to vector<32x10xf32>
      %c0_21 = arith.constant 0 : index
      %c0_22 = arith.constant 0 : index
      %33 = vector.load %arg8[%c0_21, %c0_22] : memref<32x10xf32, #tpu.memory_space<vmem>>, vector<32x10xf32>
      tpu.vector_store %arg8[%c0_21, %c0_22], %32 {strides = array<i32>} : memref<32x10xf32, #tpu.memory_space<vmem>>, vector<32x10xf32>,
      %cst_23 = arith.constant 0.000000e+00 : f32
      %34 = vector.broadcast %cst_23 : f32 to vector<32x10xf32>
      %c0_24 = arith.constant 0 : index
      %c0_25 = arith.constant 0 : index
      %35 = vector.load %arg9[%c0_24, %c0_25] : memref<32x10xf32, #tpu.memory_space<vmem>>, vector<32x10xf32>
      tpu.vector_store %arg9[%c0_24, %c0_25], %34 {strides = array<i32>} : memref<32x10xf32, #tpu.memory_space<vmem>>, vector<32x10xf32>,
    } else {
    }
    %c0_i32_2 = arith.constant 0 : i32
    %5 = arith.cmpi eq, %arg1, %c0_i32_2 : i32
    %6 = arith.extui %5 : i1 to i32
    %c0_i32_3 = arith.constant 0 : i32
    %7 = arith.cmpi ne, %6, %c0_i32_3 : i32
    scf.if %7 {
      %c0_20 = arith.constant 0 : index
      %c0_21 = arith.constant 0 : index
      %32 = vector.load %arg8[%c0_20, %c0_21] : memref<32x10xf32, #tpu.memory_space<vmem>>, vector<32x10xf32>
      %cst_22 = arith.constant dense<0xFF800000> : vector<32xf32>
      %33 = vector.multi_reduction <maximumf>, %32, %cst_22 [1] : vector<32x10xf32> to vector<32xf32>
      %34 = vector.shape_cast %33 : vector<32xf32> to vector<32x1xf32>
      %35 = vector.broadcast %34 : vector<32x1xf32> to vector<32x10xf32>
      %36 = arith.subf %32, %35 : vector<32x10xf32>
      %37 = math.exp %36 : vector<32x10xf32>
      %cst_23 = arith.constant dense<0.000000e+00> : vector<32xf32>
      %38 = vector.multi_reduction <add>, %37, %cst_23 [1] : vector<32x10xf32> to vector<32xf32>
      %39 = vector.shape_cast %38 : vector<32xf32> to vector<32x1xf32>
      %40 = vector.broadcast %39 : vector<32x1xf32> to vector<32x10xf32>
      %41 = arith.divf %37, %40 : vector<32x10xf32>
      %c0_24 = arith.constant 0 : index
      %c0_25 = arith.constant 0 : index
      %42 = vector.load %arg5[%c0_24, %c0_25] : memref<10x160xf32, #tpu.memory_space<vmem>>, vector<10x160xf32>
      %cst_26 = arith.constant dense<0.000000e+00> : vector<32x160xf32>
      %43 = tpu.matmul %41, %42, %cst_26 {dimension_numbers = #tpu.dot_dimension_numbers<[1], [0], [0], [1], [0, 0, 1, 1], [], []>} : vector<32x10xf32>, vector<10x160xf32>, vector<32x160xf32> -> vector<32x160xf32>
      %c0_27 = arith.constant 0 : index
      %c0_28 = arith.constant 0 : index
      %c0_29 = arith.constant 0 : index
      %44 = vector.load %arg4[%c0_27, %c0_28, %c0_29] : memref<32x8x160xbf16, #tpu.memory_space<vmem>>, vector<32x8x160xbf16>
      %45 = vector.shape_cast %43 : vector<32x160xf32> to vector<32x1x160xf32>
      %46 = arith.extf %44 : vector<32x8x160xbf16> to vector<32x8x160xf32>
      %47 = vector.broadcast %45 : vector<32x1x160xf32> to vector<32x8x160xf32>
      %48 = arith.mulf %46, %47 : vector<32x8x160xf32>
      %49 = vector.shape_cast %48 : vector<32x8x160xf32> to vector<256x160xf32>
      %50 = arith.truncf %49 : vector<256x160xf32> to vector<256x160xbf16>
      %c0_30 = arith.constant 0 : index
      %c0_31 = arith.constant 0 : index
      %51 = vector.load %arg10[%c0_30, %c0_31] : memref<256x160xbf16, #tpu.memory_space<vmem>>, vector<256x160xbf16>
      tpu.vector_store %arg10[%c0_30, %c0_31], %50 {strides = array<i32>} : memref<256x160xbf16, #tpu.memory_space<vmem>>, vector<256x160xbf16>,
    } else {
    }
    %c0 = arith.constant 0 : index
    %c0_4 = arith.constant 0 : index
    %8 = vector.load %arg2[%c0, %c0_4] : memref<2x256xbf16, #tpu.memory_space<vmem>>, vector<2x256xbf16>
    %c0_5 = arith.constant 0 : index
    %c0_6 = arith.constant 0 : index
    %9 = vector.load %arg10[%c0_5, %c0_6] : memref<256x160xbf16, #tpu.memory_space<vmem>>, vector<256x160xbf16>
    %cst = arith.constant dense<0.000000e+00> : vector<2x160xf32>
    %10 = tpu.matmul %8, %9, %cst {dimension_numbers = #tpu.dot_dimension_numbers<[1], [0], [0], [1], [0, 0, 1, 1], [], []>} : vector<2x256xbf16>, vector<256x160xbf16>, vector<2x160xf32> -> vector<2x160xf32>
    %c0_7 = arith.constant 0 : index
    %c0_8 = arith.constant 0 : index
    %11 = vector.load %arg6[%c0_7, %c0_8] : memref<160x10xf32, #tpu.memory_space<vmem>>, vector<160x10xf32>
    %12 = arith.mulf %10, %10 : vector<2x160xf32>
    %cst_9 = arith.constant dense<0.000000e+00> : vector<2x10xf32>
    %13 = tpu.matmul %12, %11, %cst_9 {dimension_numbers = #tpu.dot_dimension_numbers<[1], [0], [0], [1], [0, 0, 1, 1], [], []>} : vector<2x160xf32>, vector<160x10xf32>, vector<2x10xf32> -> vector<2x10xf32>
    %14 = math.sqrt %13 : vector<2x10xf32>
    %cst_10 = arith.constant 1.000000e+00 : f32
    %15 = vector.broadcast %cst_10 : f32 to vector<2x10xf32>
    %16 = arith.addf %15, %13 : vector<2x10xf32>
    %17 = arith.divf %14, %16 : vector<2x10xf32>
    %c0_11 = arith.constant 0 : index
    %c0_12 = arith.constant 0 : index
    %18 = vector.load %arg5[%c0_11, %c0_12] : memref<10x160xf32, #tpu.memory_space<vmem>>, vector<10x160xf32>
    %cst_13 = arith.constant dense<0.000000e+00> : vector<2x160xf32>
    %19 = tpu.matmul %17, %18, %cst_13 {dimension_numbers = #tpu.dot_dimension_numbers<[1], [0], [0], [1], [0, 0, 1, 1], [], []>} : vector<2x10xf32>, vector<10x160xf32>, vector<2x160xf32> -> vector<2x160xf32>
    %20 = arith.mulf %10, %19 : vector<2x160xf32>
    %c2_i32 = arith.constant 2 : i32
    %21 = arith.cmpi eq, %arg0, %c2_i32 : i32
    %22 = arith.extui %21 : i1 to i32
    %c0_i32_14 = arith.constant 0 : i32
    %23 = arith.cmpi ne, %22, %c0_i32_14 : i32
    scf.if %23 {
      %c0_20 = arith.constant 0 : index
      %c0_21 = arith.constant 0 : index
      %32 = vector.load %arg7[%c0_20, %c0_21] : memref<2x160xf32, #tpu.memory_space<vmem>>, vector<2x160xf32>
      tpu.vector_store %arg7[%c0_20, %c0_21], %20 {strides = array<i32>} : memref<2x160xf32, #tpu.memory_space<vmem>>, vector<2x160xf32>,
    } else {
    }
    %c2_i32_15 = arith.constant 2 : i32
    %24 = arith.cmpi slt, %arg0, %c2_i32_15 : i32
    %25 = arith.extui %24 : i1 to i32
    %c0_i32_16 = arith.constant 0 : i32
    %26 = arith.cmpi ne, %25, %c0_i32_16 : i32
    scf.if %26 {
      %c0_20 = arith.constant 0 : index
      %c0_21 = arith.constant 0 : index
      %32 = vector.load %arg3[%c0_20, %c0_21] : memref<256x2xbf16, #tpu.memory_space<vmem>>, vector<256x2xbf16>
      %33 = arith.truncf %20 : vector<2x160xf32> to vector<2x160xbf16>
      %cst_22 = arith.constant dense<0.000000e+00> : vector<256x160xf32>
      %34 = tpu.matmul %32, %33, %cst_22 {dimension_numbers = #tpu.dot_dimension_numbers<[1], [0], [0], [1], [0, 0, 1, 1], [], []>} : vector<256x2xbf16>, vector<2x160xbf16>, vector<256x160xf32> -> vector<256x160xf32>
      %c0_23 = arith.constant 0 : index
      %c0_24 = arith.constant 0 : index
      %c0_25 = arith.constant 0 : index
      %35 = vector.load %arg4[%c0_23, %c0_24, %c0_25] : memref<32x8x160xbf16, #tpu.memory_space<vmem>>, vector<32x8x160xbf16>
      %36 = vector.shape_cast %34 : vector<256x160xf32> to vector<32x8x160xf32>
      %37 = arith.extf %35 : vector<32x8x160xbf16> to vector<32x8x160xf32>
      %38 = arith.mulf %37, %36 : vector<32x8x160xf32>
      %cst_26 = arith.constant dense<0.000000e+00> : vector<32x160xf32>
      %39 = vector.multi_reduction <add>, %38, %cst_26 [1] : vector<32x8x160xf32> to vector<32x160xf32>
      %cst_27 = arith.constant dense<0.000000e+00> : vector<32x10xf32>
      %40 = tpu.matmul %39, %11, %cst_27 {dimension_numbers = #tpu.dot_dimension_numbers<[1], [0], [0], [1], [0, 0, 1, 1], [], []>} : vector<32x160xf32>, vector<160x10xf32>, vector<32x10xf32> -> vector<32x10xf32>
      %c0_28 = arith.constant 0 : index
      %c0_29 = arith.constant 0 : index
      %41 = vector.load %arg9[%c0_28, %c0_29] : memref<32x10xf32, #tpu.memory_space<vmem>>, vector<32x10xf32>
      %cst_30 = arith.constant 5.000000e-01 : f32
      %42 = vector.broadcast %cst_30 : f32 to vector<32x10xf32>
      %43 = arith.mulf %40, %42 : vector<32x10xf32>
      %44 = arith.addf %41, %43 : vector<32x10xf32>
      %c0_31 = arith.constant 0 : index
      %c0_32 = arith.constant 0 : index
      %45 = vector.load %arg9[%c0_31, %c0_32] : memref<32x10xf32, #tpu.memory_space<vmem>>, vector<32x10xf32>
      tpu.vector_store %arg9[%c0_31, %c0_32], %44 {strides = array<i32>} : memref<32x10xf32, #tpu.memory_space<vmem>>, vector<32x10xf32>,
    } else {
    }
    %c2_i32_17 = arith.constant 2 : i32
    %27 = arith.cmpi slt, %arg0, %c2_i32_17 : i32
    %c0_i32_18 = arith.constant 0 : i32
    %28 = arith.cmpi eq, %arg1, %c0_i32_18 : i32
    %29 = arith.andi %27, %28 : i1
    %30 = arith.extui %29 : i1 to i32
    %c0_i32_19 = arith.constant 0 : i32
    %31 = arith.cmpi ne, %30, %c0_i32_19 : i32
    scf.if %31 {
      %c0_20 = arith.constant 0 : index
      %c0_21 = arith.constant 0 : index
      %32 = vector.load %arg8[%c0_20, %c0_21] : memref<32x10xf32, #tpu.memory_space<vmem>>, vector<32x10xf32>
      %c0_22 = arith.constant 0 : index
      %c0_23 = arith.constant 0 : index
      %33 = vector.load %arg9[%c0_22, %c0_23] : memref<32x10xf32, #tpu.memory_space<vmem>>, vector<32x10xf32>
      %34 = arith.addf %32, %33 : vector<32x10xf32>
      %c0_24 = arith.constant 0 : index
      %c0_25 = arith.constant 0 : index
      %35 = vector.load %arg8[%c0_24, %c0_25] : memref<32x10xf32, #tpu.memory_space<vmem>>, vector<32x10xf32>
      tpu.vector_store %arg8[%c0_24, %c0_25], %34 {strides = array<i32>} : memref<32x10xf32, #tpu.memory_space<vmem>>, vector<32x10xf32>,
      %cst_26 = arith.constant 0.000000e+00 : f32
      %36 = vector.broadcast %cst_26 : f32 to vector<32x10xf32>
      %c0_27 = arith.constant 0 : index
      %c0_28 = arith.constant 0 : index
      %37 = vector.load %arg9[%c0_27, %c0_28] : memref<32x10xf32, #tpu.memory_space<vmem>>, vector<32x10xf32>
      tpu.vector_store %arg9[%c0_27, %c0_28], %36 {strides = array<i32>} : memref<32x10xf32, #tpu.memory_space<vmem>>, vector<32x10xf32>,
    } else {
    }
    return
  }
  func.func @transform_0(%arg0: i32, %arg1: i32) -> (i32, i32) {
    %c0_i32 = arith.constant 0 : i32
    %c0_i32_0 = arith.constant 0 : i32
    return %arg1, %c0_i32 : i32, i32
  }
  func.func @transform_1(%arg0: i32, %arg1: i32) -> (i32, i32) {
    %c0_i32 = arith.constant 0 : i32
    %c0_i32_0 = arith.constant 0 : i32
    return %c0_i32, %arg1 : i32, i32
  }
  func.func @transform_2(%arg0: i32, %arg1: i32) -> (i32, i32, i32) {
    %c0_i32 = arith.constant 0 : i32
    %c0_i32_0 = arith.constant 0 : i32
    %c0_i32_1 = arith.constant 0 : i32
    %c0_i32_2 = arith.constant 0 : i32
    return %c0_i32, %c0_i32_0, %c0_i32_1 : i32, i32, i32
  }
  func.func @transform_3(%arg0: i32, %arg1: i32) -> (i32, i32) {
    %c0_i32 = arith.constant 0 : i32
    %c0_i32_0 = arith.constant 0 : i32
    %c0_i32_1 = arith.constant 0 : i32
    return %c0_i32, %c0_i32_0 : i32, i32
  }
  func.func @transform_4(%arg0: i32, %arg1: i32) -> (i32, i32) {
    %c0_i32 = arith.constant 0 : i32
    %c0_i32_0 = arith.constant 0 : i32
    %c0_i32_1 = arith.constant 0 : i32
    return %c0_i32, %c0_i32_0 : i32, i32
  }
  func.func @transform_5(%arg0: i32, %arg1: i32) -> (i32, i32) {
    %c0_i32 = arith.constant 0 : i32
    %c0_i32_0 = arith.constant 0 : i32
    return %arg1, %c0_i32 : i32, i32
  }
}

</mosaic_0001>

<llo_original>
// kernel: tpu_custom_call.1
$region0: #{tpu_custom_call.1}
  #allocation0 [shape = 'u32[]', space=smem, size = 0x4, offset = 0x4, fixed_abs, tag = 'smem constant byte address 0x4 - core index']
  #allocation1 [shape = 'u32[144,128]{1,0:T(1,128)}', space=vmem, size = 0x12000, scoped, tag = 'internal scratch']
  #allocation2 [shape = 'f32[32,10]{1,0:T(8,128)}', space=vmem, size = 0x4000, scoped, tag = 'scratch operand']
  #allocation3 [shape = 'f32[32,10]{1,0:T(8,128)}', space=vmem, size = 0x4000, scoped, tag = 'scratch operand']
  #allocation4 [shape = 'bf16[256,160]{1,0:T(8,128)(2,1)}', space=vmem, size = 0x20000, scoped, tag = 'scratch operand']
  %s0 = inlined_call_operand.vmem [shape: bf16[2,256], index: 0, kind: input, shape index: {}]
  %s1 = inlined_call_operand.vmem [shape: bf16[256,2], index: 1, kind: input, shape index: {}]
  %s2 = inlined_call_operand.vmem [shape: bf16[32,8,160], index: 2, kind: input, shape index: {}]
  %s3 = inlined_call_operand.vmem [shape: f32[10,160], index: 3, kind: input, shape index: {}]
  %s4 = inlined_call_operand.vmem [shape: f32[160,10], index: 4, kind: input, shape index: {}]
  %s5 = inlined_call_operand.hbm [shape: f32[2,160], index: 5, kind: output, shape index: {}]
  %s6 = sld [smem:[#allocation0]]
  $region73: #{tpu_custom_call.1} parent=0
    _
  %s8 = ssub.s32 1, %s6
  %s9 = scalar_select 0, %s8, %s6
  $region1: #{tpu_custom_call.1} parent=0
    #allocation5 [shape = 'u8[2048]{0}', space=vmem, size = 0x800, scoped, tag = 'output window, operand 0, single buffered']
    #allocation6 [shape = 's32[2]{0}', space=sflag, size = 0x8, scoped, tag = 'scoped memory for tpu_custom_call.1']
    %10 = vsyncpa [#allocation6], 0
    loop: start=0, step=1, limit=5
    $region2: #{tpu_custom_call.1} parent=1 // loop_pre_header
      _
    $region3: #{tpu_custom_call.1} parent=1 // loop_header
      %s12 = sphi 0, %s16
      %p13 = scmp.ge.s32.totalorder %s12, 5
      %s19 = sphi 0, %s31
      %s20 = sphi 0, %s27
      %s21 = sphi 0, %s19
      %s22 = sphi 0, %s20
      %s23 = sphi 0, %s21
      %s24 = sphi 0, %s22
      %s34 = sphi 0, %s36
      %s37 = sphi 0, %s34
      %s38 = sphi 0, %s37
      %s54 = sphi 0, %s38
      %s60 = sphi 0, %s62
      %s63 = sphi 0, %s60
      %s64 = sphi 0, %s63
      %s80 = sphi 0, %s64
      %s84 = sphi 0, %s84
      %s86 = sphi 0, %s84
      %s87 = sphi 0, %s86
      %s101 = sphi 0, %s87
      %s105 = sphi 0, %s105
      %s107 = sphi 0, %s105
      %s108 = sphi 0, %s107
      %s122 = sphi 0, %s108
      %s126 = sphi 0, %s126
      %s128 = sphi 0, %s126
      %s129 = sphi 0, %s128
      %s143 = sphi 0, %s129
      %s149 = sphi 0, %s151
      %s152 = sphi 0, %s149
      %s153 = sphi 0, %s152
      %s169 = sphi 0, %s153
    $region4: #{tpu_custom_call.1} parent=1 // loop_header_branch
      %15 = sbr.rel (%p13) target = $region8
    $region5: #{tpu_custom_call.1} parent=1 // loop_body
      %s17 = ssub.s32 %s12, 1
      %s18 = ssub.s32 %s12, 2
      %s25 = sadd.s32 1, %s20
      %p26 = scmp.ge.s32.totalorder %s25, 1
      %s27 = scalar_select %p26, 0, %s25
      %s28 = sadd.s32 1, %s19
      %s29 = scalar_select %p26, %s28, %s19
      %p30 = scmp.ge.s32.totalorder %s29, 3
      %s31 = scalar_select %p30, 0, %s29
      %s32 = ssub.s32 %s20, %s27
      %p33 = scmp.eq.s32.totalorder %s32, 0
      %s35 = sadd.s32 %s34, 1
      %s36 = scalar_select %p33, %s34, %s35
      %p39 = pneg %p33
      %p40 = scmp.eq.s32.totalorder %s12, 2
      %p41 = por %p39, %p40
      %p42 = scmp.ne.s32.totalorder %s34, %s37
      %p43 = scmp.eq.s32.totalorder %s12, 0
      %p44 = por %p42, %p43
      %p45 = scmp.ne.s32.totalorder %s34, %s37
      %p46 = scmp.eq.s32.totalorder %s17, 2
      %p47 = por %p45, %p46
      %p48 = scmp.ne.s32.totalorder %s37, %s38
      %p49 = scmp.eq.s32.totalorder %s17, 0
      %p50 = por %p48, %p49
      %p51 = scmp.ne.s32.totalorder %s37, %s38
      %p52 = scmp.eq.s32.totalorder %s18, 2
      %p53 = por %p51, %p52
      %p55 = scmp.ne.s32.totalorder %s38, %s54
      %p56 = scmp.eq.s32.totalorder %s18, 0
      %p57 = por %p55, %p56
      %s58 = ssub.s32 %s20, %s27
      %p59 = scmp.eq.s32.totalorder %s58, 0
      %s61 = sadd.s32 %s60, 1
      %s62 = scalar_select %p59, %s60, %s61
      %p65 = pneg %p59
      %p66 = scmp.eq.s32.totalorder %s12, 2
      %p67 = por %p65, %p66
      %p68 = scmp.ne.s32.totalorder %s60, %s63
      %p69 = scmp.eq.s32.totalorder %s12, 0
      %p70 = por %p68, %p69
      %p71 = scmp.ne.s32.totalorder %s60, %s63
      %p72 = scmp.eq.s32.totalorder %s17, 2
      %p73 = por %p71, %p72
      %p74 = scmp.ne.s32.totalorder %s63, %s64
      %p75 = scmp.eq.s32.totalorder %s17, 0
      %p76 = por %p74, %p75
      %p77 = scmp.ne.s32.totalorder %s63, %s64
      %p78 = scmp.eq.s32.totalorder %s18, 2
      %p79 = por %p77, %p78
      %p81 = scmp.ne.s32.totalorder %s64, %s80
      %p82 = scmp.eq.s32.totalorder %s18, 0
      %p83 = por %p81, %p82
      %s85 = sadd.s32 %s84, 1
      %p88 = scmp.eq.s32.totalorder %s12, 2
      %p89 = scmp.ne.s32.totalorder %s84, %s86
      %p90 = scmp.eq.s32.totalorder %s12, 0
      %p91 = por %p89, %p90
      %p92 = scmp.ne.s32.totalorder %s84, %s86
      %p93 = scmp.eq.s32.totalorder %s17, 2
      %p94 = por %p92, %p93
      %p95 = scmp.ne.s32.totalorder %s86, %s87
      %p96 = scmp.eq.s32.totalorder %s17, 0
      %p97 = por %p95, %p96
      %p98 = scmp.ne.s32.totalorder %s86, %s87
      %p99 = scmp.eq.s32.totalorder %s18, 2
      %p100 = por %p98, %p99
      %p102 = scmp.ne.s32.totalorder %s87, %s101
      %p103 = scmp.eq.s32.totalorder %s18, 0
      %p104 = por %p102, %p103
      %s106 = sadd.s32 %s105, 1
      %p109 = scmp.eq.s32.totalorder %s12, 2
      %p110 = scmp.ne.s32.totalorder %s105, %s107
      %p111 = scmp.eq.s32.totalorder %s12, 0
      %p112 = por %p110, %p111
      %p113 = scmp.ne.s32.totalorder %s105, %s107
      %p114 = scmp.eq.s32.totalorder %s17, 2
      %p115 = por %p113, %p114
      %p116 = scmp.ne.s32.totalorder %s107, %s108
      %p117 = scmp.eq.s32.totalorder %s17, 0
      %p118 = por %p116, %p117
      %p119 = scmp.ne.s32.totalorder %s107, %s108
      %p120 = scmp.eq.s32.totalorder %s18, 2
      %p121 = por %p119, %p120
      %p123 = scmp.ne.s32.totalorder %s108, %s122
      %p124 = scmp.eq.s32.totalorder %s18, 0
      %p125 = por %p123, %p124
      %s127 = sadd.s32 %s126, 1
      %p130 = scmp.eq.s32.totalorder %s12, 2
      %p131 = scmp.ne.s32.totalorder %s126, %s128
      %p132 = scmp.eq.s32.totalorder %s12, 0
      %p133 = por %p131, %p132
      %p134 = scmp.ne.s32.totalorder %s126, %s128
      %p135 = scmp.eq.s32.totalorder %s17, 2
      %p136 = por %p134, %p135
      %p137 = scmp.ne.s32.totalorder %s128, %s129
      %p138 = scmp.eq.s32.totalorder %s17, 0
      %p139 = por %p137, %p138
      %p140 = scmp.ne.s32.totalorder %s128, %s129
      %p141 = scmp.eq.s32.totalorder %s18, 2
      %p142 = por %p140, %p141
      %p144 = scmp.ne.s32.totalorder %s129, %s143
      %p145 = scmp.eq.s32.totalorder %s18, 0
      %p146 = por %p144, %p145
      %s147 = ssub.s32 %s20, %s27
      %p148 = scmp.eq.s32.totalorder %s147, 0
      %s150 = sadd.s32 %s149, 1
      %s151 = scalar_select %p148, %s149, %s150
      %p154 = pneg %p148
      %p155 = scmp.eq.s32.totalorder %s12, 2
      %p156 = por %p154, %p155
      %p157 = scmp.ne.s32.totalorder %s149, %s152
      %p158 = scmp.eq.s32.totalorder %s12, 0
      %p159 = por %p157, %p158
      %p160 = scmp.ne.s32.totalorder %s149, %s152
      %p161 = scmp.eq.s32.totalorder %s17, 2
      %p162 = por %p160, %p161
      %p163 = scmp.ne.s32.totalorder %s152, %s153
      %p164 = scmp.eq.s32.totalorder %s17, 0
      %p165 = por %p163, %p164
      %p166 = scmp.ne.s32.totalorder %s152, %s153
      %p167 = scmp.eq.s32.totalorder %s18, 2
      %p168 = por %p166, %p167
      %p170 = scmp.ne.s32.totalorder %s153, %s169
      %p171 = scmp.eq.s32.totalorder %s18, 0
      %p172 = por %p170, %p171
      %p173 = scmp.le.s32.totalorder 1, %s12
      %p174 = scmp.lt.s32.totalorder %s12, 4
      %p175 = pnand %p173, %p174
      %p176 = pneg %p175
      // Predicated region
      $region9: #{tpu_custom_call.1} parent=5 // pred_check
        _
      $region10: #{tpu_custom_call.1} parent=5 // pred_check_branch
        %178 = sbr.rel (%p175) target = $region12
      $region11: #{tpu_custom_call.1} parent=5 // pred_region
        %s179 = ssub.s32 %s12, 1
        // Predicated region
        $region13: #{tpu_custom_call.1} parent=11 // pred_check
          %p180 = pneg %p50
        $region14: #{tpu_custom_call.1} parent=11 // pred_check_branch
          %182 = sbr.rel (%p180) target = $region16
        $region15: #{tpu_custom_call.1} parent=11 // pred_region
          %p183 = scmp.lt.s32.totalorder %s22, 0
          %s184 = scalar_select %p183, %s22, 0
          %s185 = smul.addr %s184, 2
          %s186 = scalar_lea.vmem %s0, %s185
        $region16: #{tpu_custom_call.1} parent=11 // pred_fallthru
          _
        // Predicated region
        $region17: #{tpu_custom_call.1} parent=11 // pred_check
          %p187 = pneg %p76
        $region18: #{tpu_custom_call.1} parent=11 // pred_check_branch
          %189 = sbr.rel (%p187) target = $region20
        $region19: #{tpu_custom_call.1} parent=11 // pred_region
          %p190 = scmp.lt.s32.totalorder %s22, 0
          %s191 = scalar_select %p190, %s22, 0
          %s192 = smul.addr %s191, 4
          %s193 = scalar_lea.vmem %s1, %s192
        $region20: #{tpu_custom_call.1} parent=11 // pred_fallthru
          _
        // Predicated region
        $region21: #{tpu_custom_call.1} parent=11 // pred_check
          %p194 = pneg %p97
        $region22: #{tpu_custom_call.1} parent=11 // pred_check_branch
          %196 = sbr.rel (%p194) target = $region24
        $region23: #{tpu_custom_call.1} parent=11 // pred_region
          _
        $region24: #{tpu_custom_call.1} parent=11 // pred_fallthru
          _
        // Predicated region
        $region25: #{tpu_custom_call.1} parent=11 // pred_check
          %p197 = pneg %p118
        $region26: #{tpu_custom_call.1} parent=11 // pred_check_branch
          %199 = sbr.rel (%p197) target = $region28
        $region27: #{tpu_custom_call.1} parent=11 // pred_region
          _
        $region28: #{tpu_custom_call.1} parent=11 // pred_fallthru
          _
        // Predicated region
        $region29: #{tpu_custom_call.1} parent=11 // pred_check
          %p200 = pneg %p139
        $region30: #{tpu_custom_call.1} parent=11 // pred_check_branch
          %202 = sbr.rel (%p200) target = $region32
        $region31: #{tpu_custom_call.1} parent=11 // pred_region
          _
        $region32: #{tpu_custom_call.1} parent=11 // pred_fallthru
          _
      $region12: #{tpu_custom_call.1} parent=5 // pred_fallthru
        _
      %p203 = scmp.lt.s32.totalorder %s12, 3
      // Predicated region
      $region33: #{tpu_custom_call.1} parent=5 // pred_check
        %p204 = pneg %p203
      $region34: #{tpu_custom_call.1} parent=5 // pred_check_branch
        %206 = sbr.rel (%p204) target = $region36
      $region35: #{tpu_custom_call.1} parent=5 // pred_region
        _
      $region36: #{tpu_custom_call.1} parent=5 // pred_fallthru
        _
      %p207 = scmp.le.s32.totalorder 1, %s12
      %p208 = scmp.lt.s32.totalorder %s12, 4
      %p209 = pnand %p207, %p208
      %p210 = pneg %p209
      // Predicated region
      $region37: #{tpu_custom_call.1} parent=5 // pred_check
        _
      $region38: #{tpu_custom_call.1} parent=5 // pred_check_branch
        %212 = sbr.rel (%p209) target = $region40
      $region39: #{tpu_custom_call.1} parent=5 // pred_region
        %s213 = ssub.s32 %s12, 1
        %p214 = scmp.lt.s32.totalorder %s22, 0
        %s215 = scalar_select %p214, %s22, 0
        %s216 = smul.addr %s215, 2
        %s217 = scalar_lea.vmem %s0, %s216
        %p218 = pneg %p50
        %p219 = pneg %p47
        %p220 = scmp.lt.s32.totalorder %s22, 0
        %s221 = scalar_select %p220, %s22, 0
        %s222 = smul.addr %s221, 4
        %s223 = scalar_lea.vmem %s1, %s222
        %p224 = pneg %p76
        %p225 = pneg %p73
        %p226 = pneg %p97
        %p227 = pneg %p94
        %p228 = pneg %p118
        %p229 = pneg %p115
        %p230 = pneg %p139
        %p231 = pneg %p136
        %p232 = pneg %p165
        %p233 = pneg %p162
        %p234 = scmp.lt.s32.totalorder %s22, 0
        %s235 = scalar_select %p234, %s22, 0
        %s236 = smul.addr %s235, 2
        %s237 = scalar_lea.vmem %s0, %s236
        %p238 = scmp.lt.s32.totalorder %s22, 0
        %s239 = scalar_select %p238, %s22, 0
        %s240 = smul.addr %s239, 4
        %s241 = scalar_lea.vmem %s1, %s240
        %p243 = scmp.eq.s32.totalorder %s21, 0
        %p244 = scmp.eq.s32.totalorder %s22, 0
        %p245 = pnand %p243, %p244
        %p246 = pneg %p245
        // Predicated region
        $region41: #{tpu_custom_call.1} parent=39 // pred_check
          _
        $region42: #{tpu_custom_call.1} parent=39 // pred_check_branch
          %248 = sbr.rel (%p245) target = $region44
        $region43: #{tpu_custom_call.1} parent=39 // pred_region
          %vm249 = vcmask 80896
          %250 = vst.msk [vmem:[#allocation2] sm:$0xff] %vm249, 0.0
          %251 = vst.msk [vmem:[#allocation2 + $0x8] sm:$0xff] %vm249, 0.0
          %252 = vst.msk [vmem:[#allocation2 + $0x10] sm:$0xff] %vm249, 0.0
          %253 = vst.msk [vmem:[#allocation2 + $0x18] sm:$0xff] %vm249, 0.0
          %254 = vst.msk [vmem:[#allocation3] sm:$0xff] %vm249, 0.0
          %255 = vst.msk [vmem:[#allocation3 + $0x8] sm:$0xff] %vm249, 0.0
          %256 = vst.msk [vmem:[#allocation3 + $0x10] sm:$0xff] %vm249, 0.0
          %257 = vst.msk [vmem:[#allocation3 + $0x18] sm:$0xff] %vm249, 0.0
        $region44: #{tpu_custom_call.1} parent=39 // pred_fallthru
          _
        // Predicated region
        $region45: #{tpu_custom_call.1} parent=39 // pred_check
          %p258 = pneg %p244
        $region46: #{tpu_custom_call.1} parent=39 // pred_check_branch
          %260 = sbr.rel (%p258) target = $region48
        $region47: #{tpu_custom_call.1} parent=39 // pred_region
          %v261 = vld [vmem:[#allocation2] sm:$0xff]
          %v262 = vld [vmem:[#allocation2 + $0x8] sm:$0xff]
          %v263 = vld [vmem:[#allocation2 + $0x10] sm:$0xff]
          %v264 = vld [vmem:[#allocation2 + $0x18] sm:$0xff]
          %vm265 = vcmask 80896
          %v266 = vsel %vm265, %v261, -inf
          %267 = vmax.xlane.f32.xlu0 %v266
          %v268 = vpop.xlane.xlu0 %267
          %v269 = vsel %vm265, %v262, -inf
          %270 = vmax.xlane.f32.xlu0 %v269
          %v271 = vpop.xlane.xlu0 %270
          %v272 = vsel %vm265, %v263, -inf
          %273 = vmax.xlane.f32.xlu0 %v272
          %v274 = vpop.xlane.xlu0 %273
          %v275 = vsel %vm265, %v264, -inf
          %276 = vmax.xlane.f32.xlu0 %v275
          %v277 = vpop.xlane.xlu0 %276
          %v278 = vsub.f32 %v261, %v268
          %v279 = vsub.f32 %v262, %v271
          %v280 = vsub.f32 %v263, %v274
          %v281 = vsub.f32 %v264, %v277
          %v282 = vmul.f32 %v278, 1.442695
          %v283 = vpow.pop %v282
          %v284 = vmul.f32 %v279, 1.442695
          %v285 = vpow.pop %v284
          %v286 = vmul.f32 %v280, 1.442695
          %v287 = vpow.pop %v286
          %v288 = vmul.f32 %v281, 1.442695
          %v289 = vpow.pop %v288
          %v290 = vsel %vm265, %v283, 0.0
          %291 = vadd.xlane.f32.xlu0 %v290
          %v292 = vpop.xlane.xlu0 %291
          %v293 = vsel %vm265, %v285, 0.0
          %294 = vadd.xlane.f32.xlu0 %v293
          %v295 = vpop.xlane.xlu0 %294
          %v296 = vsel %vm265, %v287, 0.0
          %297 = vadd.xlane.f32.xlu0 %v296
          %v298 = vpop.xlane.xlu0 %297
          %v299 = vsel %vm265, %v289, 0.0
          %300 = vadd.xlane.f32.xlu0 %v299
          %v301 = vpop.xlane.xlu0 %300
          %v302 = vrcp.pop %v292
          %v303 = vmul.f32 %v283, %v302
          %v304 = vrcp.pop %v295
          %v305 = vmul.f32 %v285, %v304
          %v306 = vrcp.pop %v298
          %v307 = vmul.f32 %v287, %v306
          %v308 = vrcp.pop %v301
          %v309 = vmul.f32 %v289, %v308
          %v310 = vld [vmem:[%s3] sm:$0xff]
          %v311 = vld [vmem:[%s3 + $0x8] sm:$0xff]
          %v312 = vld [vmem:[%s3 + $0x10] sm:$0x3]
          %v313 = vld [vmem:[%s3 + $0x18] sm:$0x3]
          %v315 = vsel %vm265, %v303, 0
          %v318 = vsel %vm265, %v305, 0
          %v321 = vsel %vm265, %v307, 0
          %v324 = vsel %vm265, %v309, 0
          %vm326 = vcmask 1041408
          %v328 = vsel %vm326, %v312, 0
          %v331 = vsel %vm326, %v313, 0
          %333 = vmatprep.subr.mxu0 0.0
          %334 = vmatpush1.msra.mxu0 0.0
          %335 = vmatprep.subr.mxu0 0.0
          %336 = vmatpush1.msra.mxu0 0.0
          %337 = vmatprep.subr.mxu0 0.0
          %338 = vmatpush1.msra.mxu0 0.0
          %339 = vmatprep.subr.mxu0 0.0
          %340 = vmatpush1.msra.mxu0 0.0
          %341 = vmatprep.subr.mxu0 0.0
          %342 = vmatpush1.msra.mxu0 0.0
          %343 = vmatprep.subr.mxu0 0.0
          %344 = vmatpush1.msra.mxu0 0.0
          %345 = vmatprep.subr.mxu0 0.0
          %346 = vmatpush1.msra.mxu0 0.0
          %347 = vmatprep.subr.mxu0 0.0
          %348 = vmatpush1.msra.mxu0 0.0
          %349 = vmatprep.subr.mxu0 0.0
          %350 = vmatpush1.msra.mxu0 0.0
          %351 = vmatprep.subr.mxu0 0.0
          %352 = vmatpush1.msra.mxu0 0.0
          %353 = vmatprep.subr.mxu0 0.0
          %354 = vmatpush1.msra.mxu0 0.0
          %355 = vmatprep.subr.mxu0 0.0
          %356 = vmatpush1.msra.mxu0 0.0
          %357 = vmatprep.subr.mxu0 0.0
          %358 = vmatpush1.msra.mxu0 0.0
          %359 = vmatprep.subr.mxu0 0.0
          %360 = vmatpush1.msra.mxu0 0.0
          %361 = vmatprep.subr.mxu0 %v331
          %362 = vmatpush1.msra.mxu0 %v328
          %363 = vmatprep.subr.mxu0 %v311
          %364 = vmatpush1.msra.mxu0 %v310
          %365 = vmatprep.subr.mxu0 0.0
          %366 = vmatpush2.msra.mxu0 0.0
          %367 = vmatprep.subr.mxu0 0.0
          %368 = vmatpush2.msra.mxu0 0.0
          %369 = vmatprep.subr.mxu0 0.0
          %370 = vmatpush2.msra.mxu0 0.0
          %371 = vmatprep.subr.mxu0 0.0
          %372 = vmatpush2.msra.mxu0 0.0
          %373 = vmatprep.subr.mxu0 0.0
          %374 = vmatpush2.msra.mxu0 0.0
          %375 = vmatprep.subr.mxu0 0.0
          %376 = vmatpush2.msra.mxu0 0.0
          %377 = vmatprep.subr.mxu0 0.0
          %378 = vmatpush2.msra.mxu0 0.0
          %379 = vmatprep.subr.mxu0 0.0
          %380 = vmatpush2.msra.mxu0 0.0
          %381 = vmatprep.subr.mxu0 0.0
          %382 = vmatpush2.msra.mxu0 0.0
          %383 = vmatprep.subr.mxu0 0.0
          %384 = vmatpush2.msra.mxu0 0.0
          %385 = vmatprep.subr.mxu0 0.0
          %386 = vmatpush2.msra.mxu0 0.0
          %387 = vmatprep.subr.mxu0 0.0
          %388 = vmatpush2.msra.mxu0 0.0
          %389 = vmatprep.subr.mxu0 0.0
          %390 = vmatpush2.msra.mxu0 0.0
          %391 = vmatprep.subr.mxu0 0.0
          %392 = vmatpush2.msra.mxu0 0.0
          %393 = vmatprep.subr.mxu0 0.0
          %394 = vmatpush2.msra.mxu0 0.0
          %395 = vmatprep.subr.mxu0 0.0
          %396 = vmatpush2.msra.mxu0 0.0
          %397 = vmatprep.mubr.f32.mxu0 0.0
          %398 = vmatmul.mubr.f32.gmra.mxu0 %v315
          %v399 = vpop.f32.mrf.mxu0
          %v400 = vadd.f32 0.0, %v399
          %v401 = vpop.f32.mrf.mxu0
          %v402 = vadd.f32 0.0, %v401
          %403 = vmatprep.mubr.f32.mxu0 0.0
          %404 = vmatmul.mubr.f32.gmra.mxu0 %v318
          %v405 = vpop.f32.mrf.mxu0
          %v406 = vadd.f32 0.0, %v405
          %v407 = vpop.f32.mrf.mxu0
          %v408 = vadd.f32 0.0, %v407
          %409 = vmatprep.mubr.f32.mxu0 0.0
          %410 = vmatmul.mubr.f32.gmra.mxu0 %v321
          %v411 = vpop.f32.mrf.mxu0
          %v412 = vadd.f32 0.0, %v411
          %v413 = vpop.f32.mrf.mxu0
          %v414 = vadd.f32 0.0, %v413
          %415 = vmatprep.mubr.f32.mxu0 0.0
          %416 = vmatmul.mubr.f32.gmra.mxu0 %v324
          %v417 = vpop.f32.mrf.mxu0
          %v418 = vadd.f32 0.0, %v417
          %v419 = vpop.f32.mrf.mxu0
          %v420 = vadd.f32 0.0, %v419
          %421 = vdwg.mxu0
          %v422 = vld [vmem:[%s2] sm:$0xff]
          %v423 = vld [vmem:[%s2 + $0x8] sm:$0xff]
          %v424 = vld [vmem:[%s2 + $0x10] sm:$0xff]
          %v425 = vld [vmem:[%s2 + $0x18] sm:$0xff]
          %v426 = vld [vmem:[%s2 + $0x20] sm:$0xff]
          %v427 = vld [vmem:[%s2 + $0x28] sm:$0xff]
          %v428 = vld [vmem:[%s2 + $0x30] sm:$0xff]
          %v429 = vld [vmem:[%s2 + $0x38] sm:$0xff]
          %v430 = vld [vmem:[%s2 + $0x40] sm:$0xff]
          %v431 = vld [vmem:[%s2 + $0x48] sm:$0xff]
          %v432 = vld [vmem:[%s2 + $0x50] sm:$0xff]
          %v433 = vld [vmem:[%s2 + $0x58] sm:$0xff]
          %v434 = vld [vmem:[%s2 + $0x60] sm:$0xff]
          %v435 = vld [vmem:[%s2 + $0x68] sm:$0xff]
          %v436 = vld [vmem:[%s2 + $0x70] sm:$0xff]
          %v437 = vld [vmem:[%s2 + $0x78] sm:$0xff]
          %v438 = vld [vmem:[%s2 + $0x80] sm:$0xff]
          %v439 = vld [vmem:[%s2 + $0x88] sm:$0xff]
          %v440 = vld [vmem:[%s2 + $0x90] sm:$0xff]
          %v441 = vld [vmem:[%s2 + $0x98] sm:$0xff]
          %v442 = vld [vmem:[%s2 + $0xa0] sm:$0xff]
          %v443 = vld [vmem:[%s2 + $0xa8] sm:$0xff]
          %v444 = vld [vmem:[%s2 + $0xb0] sm:$0xff]
          %v445 = vld [vmem:[%s2 + $0xb8] sm:$0xff]
          %v446 = vld [vmem:[%s2 + $0xc0] sm:$0xff]
          %v447 = vld [vmem:[%s2 + $0xc8] sm:$0xff]
          %v448 = vld [vmem:[%s2 + $0xd0] sm:$0xff]
          %v449 = vld [vmem:[%s2 + $0xd8] sm:$0xff]
          %v450 = vld [vmem:[%s2 + $0xe0] sm:$0xff]
          %v451 = vld [vmem:[%s2 + $0xe8] sm:$0xff]
          %v452 = vld [vmem:[%s2 + $0xf0] sm:$0xff]
          %v453 = vld [vmem:[%s2 + $0xf8] sm:$0xff]
          %v462 = vcombine.low %v400, %v402
          %v463 = vcombine.high %v400, %v402
          %v465 = vunpack.c.l.s4 1966171168
          %v466 = vunpack.c.0.s8 %v465
          %v467 = vlaneseq
          %v468 = vshrl.u32 %v467, 7
          %v469 = vsub.s32 %v466, %v468
          %v470 = vrot.slane %v462, %v469
          %v472 = vunpack.c.l.s4 1966171168
          %v473 = vunpack.c.0.s8 %v472
          %v474 = vlaneseq
          %v475 = vshrl.u32 %v474, 7
          %v476 = vsub.s32 %v473, %v475
          %v477 = vrot.slane %v463, %v476
          %v478 = vcombine.high %v470, %v470
          %v479 = vcombine.high %v477, %v477
          %v481 = vunpack.c.l.s4 1966171168
          %v482 = vunpack.c.0.s8 %v481
          %v483 = vlaneseq
          %v484 = vshrl.u32 %v483, 7
          %v485 = vsub.s32 %v482, %v484
          %v486 = vrot.slane %v470, %v485
          %v488 = vunpack.c.l.s4 1966171168
          %v489 = vunpack.c.0.s8 %v488
          %v490 = vlaneseq
          %v491 = vshrl.u32 %v490, 7
          %v492 = vsub.s32 %v489, %v491
          %v493 = vrot.slane %v477, %v492
          %v495 = vunpack.c.l.s4 1966171168
          %v496 = vunpack.c.0.s8 %v495
          %v497 = vlaneseq
          %v498 = vshrl.u32 %v497, 7
          %v499 = vsub.s32 %v496, %v498
          %v500 = vrot.slane %v478, %v499
          %v502 = vunpack.c.l.s4 1966171168
          %v503 = vunpack.c.0.s8 %v502
          %v504 = vlaneseq
          %v505 = vshrl.u32 %v504, 7
          %v506 = vsub.s32 %v503, %v505
          %v507 = vrot.slane %v479, %v506
          %v508 = vcombine.high %v486, %v486
          %v509 = vcombine.high %v493, %v493
          %v510 = vcombine.high %v500, %v500
          %v511 = vcombine.high %v507, %v507
          %v512 = vcombine.low %v406, %v408
          %v513 = vcombine.high %v406, %v408
          %v515 = vunpack.c.l.s4 1966171168
          %v516 = vunpack.c.0.s8 %v515
          %v517 = vlaneseq
          %v518 = vshrl.u32 %v517, 7
          %v519 = vsub.s32 %v516, %v518
          %v520 = vrot.slane %v512, %v519
          %v522 = vunpack.c.l.s4 1966171168
          %v523 = vunpack.c.0.s8 %v522
          %v524 = vlaneseq
          %v525 = vshrl.u32 %v524, 7
          %v526 = vsub.s32 %v523, %v525
          %v527 = vrot.slane %v513, %v526
          %v528 = vcombine.high %v520, %v520
          %v529 = vcombine.high %v527, %v527
          %v531 = vunpack.c.l.s4 1966171168
          %v532 = vunpack.c.0.s8 %v531
          %v533 = vlaneseq
          %v534 = vshrl.u32 %v533, 7
          %v535 = vsub.s32 %v532, %v534
          %v536 = vrot.slane %v520, %v535
          %v538 = vunpack.c.l.s4 1966171168
          %v539 = vunpack.c.0.s8 %v538
          %v540 = vlaneseq
          %v541 = vshrl.u32 %v540, 7
          %v542 = vsub.s32 %v539, %v541
          %v543 = vrot.slane %v527, %v542
          %v545 = vunpack.c.l.s4 1966171168
          %v546 = vunpack.c.0.s8 %v545
          %v547 = vlaneseq
          %v548 = vshrl.u32 %v547, 7
          %v549 = vsub.s32 %v546, %v548
          %v550 = vrot.slane %v528, %v549
          %v552 = vunpack.c.l.s4 1966171168
          %v553 = vunpack.c.0.s8 %v552
          %v554 = vlaneseq
          %v555 = vshrl.u32 %v554, 7
          %v556 = vsub.s32 %v553, %v555
          %v557 = vrot.slane %v529, %v556
          %v558 = vcombine.high %v536, %v536
          %v559 = vcombine.high %v543, %v543
          %v560 = vcombine.high %v550, %v550
          %v561 = vcombine.high %v557, %v557
          %v562 = vcombine.low %v412, %v414
          %v563 = vcombine.high %v412, %v414
          %v565 = vunpack.c.l.s4 1966171168
          %v566 = vunpack.c.0.s8 %v565
          %v567 = vlaneseq
          %v568 = vshrl.u32 %v567, 7
          %v569 = vsub.s32 %v566, %v568
          %v570 = vrot.slane %v562, %v569
          %v572 = vunpack.c.l.s4 1966171168
          %v573 = vunpack.c.0.s8 %v572
          %v574 = vlaneseq
          %v575 = vshrl.u32 %v574, 7
          %v576 = vsub.s32 %v573, %v575
          %v577 = vrot.slane %v563, %v576
          %v578 = vcombine.high %v570, %v570
          %v579 = vcombine.high %v577, %v577
          %v581 = vunpack.c.l.s4 1966171168
          %v582 = vunpack.c.0.s8 %v581
          %v583 = vlaneseq
          %v584 = vshrl.u32 %v583, 7
          %v585 = vsub.s32 %v582, %v584
          %v586 = vrot.slane %v570, %v585
          %v588 = vunpack.c.l.s4 1966171168
          %v589 = vunpack.c.0.s8 %v588
          %v590 = vlaneseq
          %v591 = vshrl.u32 %v590, 7
          %v592 = vsub.s32 %v589, %v591
          %v593 = vrot.slane %v577, %v592
          %v595 = vunpack.c.l.s4 1966171168
          %v596 = vunpack.c.0.s8 %v595
          %v597 = vlaneseq
          %v598 = vshrl.u32 %v597, 7
          %v599 = vsub.s32 %v596, %v598
          %v600 = vrot.slane %v578, %v599
          %v602 = vunpack.c.l.s4 1966171168
          %v603 = vunpack.c.0.s8 %v602
          %v604 = vlaneseq
          %v605 = vshrl.u32 %v604, 7
          %v606 = vsub.s32 %v603, %v605
          %v607 = vrot.slane %v579, %v606
          %v608 = vcombine.high %v586, %v586
          %v609 = vcombine.high %v593, %v593
          %v610 = vcombine.high %v600, %v600
          %v611 = vcombine.high %v607, %v607
          %v612 = vcombine.low %v418, %v420
          %v613 = vcombine.high %v418, %v420
          %v615 = vunpack.c.l.s4 1966171168
          %v616 = vunpack.c.0.s8 %v615
          %v617 = vlaneseq
          %v618 = vshrl.u32 %v617, 7
          %v619 = vsub.s32 %v616, %v618
          %v620 = vrot.slane %v612, %v619
          %v622 = vunpack.c.l.s4 1966171168
          %v623 = vunpack.c.0.s8 %v622
          %v624 = vlaneseq
          %v625 = vshrl.u32 %v624, 7
          %v626 = vsub.s32 %v623, %v625
          %v627 = vrot.slane %v613, %v626
          %v628 = vcombine.high %v620, %v620
          %v629 = vcombine.high %v627, %v627
          %v631 = vunpack.c.l.s4 1966171168
          %v632 = vunpack.c.0.s8 %v631
          %v633 = vlaneseq
          %v634 = vshrl.u32 %v633, 7
          %v635 = vsub.s32 %v632, %v634
          %v636 = vrot.slane %v620, %v635
          %v638 = vunpack.c.l.s4 1966171168
          %v639 = vunpack.c.0.s8 %v638
          %v640 = vlaneseq
          %v641 = vshrl.u32 %v640, 7
          %v642 = vsub.s32 %v639, %v641
          %v643 = vrot.slane %v627, %v642
          %v645 = vunpack.c.l.s4 1966171168
          %v646 = vunpack.c.0.s8 %v645
          %v647 = vlaneseq
          %v648 = vshrl.u32 %v647, 7
          %v649 = vsub.s32 %v646, %v648
          %v650 = vrot.slane %v628, %v649
          %v652 = vunpack.c.l.s4 1966171168
          %v653 = vunpack.c.0.s8 %v652
          %v654 = vlaneseq
          %v655 = vshrl.u32 %v654, 7
          %v656 = vsub.s32 %v653, %v655
          %v657 = vrot.slane %v629, %v656
          %v658 = vcombine.high %v636, %v636
          %v659 = vcombine.high %v643, %v643
          %v660 = vcombine.high %v650, %v650
          %v661 = vcombine.high %v657, %v657
          %v662 = vunpack.c.l.bf16 %v422
          %v663 = vunpack.c.h.bf16 %v422
          %v664 = vunpack.c.l.bf16 %v423
          %v665 = vunpack.c.h.bf16 %v423
          %v666 = vunpack.c.l.bf16 %v424
          %v667 = vunpack.c.h.bf16 %v424
          %v668 = vunpack.c.l.bf16 %v425
          %v669 = vunpack.c.h.bf16 %v425
          %v670 = vunpack.c.l.bf16 %v426
          %v671 = vunpack.c.h.bf16 %v426
          %v672 = vunpack.c.l.bf16 %v427
          %v673 = vunpack.c.h.bf16 %v427
          %v674 = vunpack.c.l.bf16 %v428
          %v675 = vunpack.c.h.bf16 %v428
          %v676 = vunpack.c.l.bf16 %v429
          %v677 = vunpack.c.h.bf16 %v429
          %v678 = vunpack.c.l.bf16 %v430
          %v679 = vunpack.c.h.bf16 %v430
          %v680 = vunpack.c.l.bf16 %v431
          %v681 = vunpack.c.h.bf16 %v431
          %v682 = vunpack.c.l.bf16 %v432
          %v683 = vunpack.c.h.bf16 %v432
          %v684 = vunpack.c.l.bf16 %v433
          %v685 = vunpack.c.h.bf16 %v433
          %v686 = vunpack.c.l.bf16 %v434
          %v687 = vunpack.c.h.bf16 %v434
          %v688 = vunpack.c.l.bf16 %v435
          %v689 = vunpack.c.h.bf16 %v435
          %v690 = vunpack.c.l.bf16 %v436
          %v691 = vunpack.c.h.bf16 %v436
          %v692 = vunpack.c.l.bf16 %v437
          %v693 = vunpack.c.h.bf16 %v437
          %v694 = vunpack.c.l.bf16 %v438
          %v695 = vunpack.c.h.bf16 %v438
          %v696 = vunpack.c.l.bf16 %v439
          %v697 = vunpack.c.h.bf16 %v439
          %v698 = vunpack.c.l.bf16 %v440
          %v699 = vunpack.c.h.bf16 %v440
          %v700 = vunpack.c.l.bf16 %v441
          %v701 = vunpack.c.h.bf16 %v441
          %v702 = vunpack.c.l.bf16 %v442
          %v703 = vunpack.c.h.bf16 %v442
          %v704 = vunpack.c.l.bf16 %v443
          %v705 = vunpack.c.h.bf16 %v443
          %v706 = vunpack.c.l.bf16 %v444
          %v707 = vunpack.c.h.bf16 %v444
          %v708 = vunpack.c.l.bf16 %v445
          %v709 = vunpack.c.h.bf16 %v445
          %v710 = vunpack.c.l.bf16 %v446
          %v711 = vunpack.c.h.bf16 %v446
          %v712 = vunpack.c.l.bf16 %v447
          %v713 = vunpack.c.h.bf16 %v447
          %v714 = vunpack.c.l.bf16 %v448
          %v715 = vunpack.c.h.bf16 %v448
          %v716 = vunpack.c.l.bf16 %v449
          %v717 = vunpack.c.h.bf16 %v449
          %v718 = vunpack.c.l.bf16 %v450
          %v719 = vunpack.c.h.bf16 %v450
          %v720 = vunpack.c.l.bf16 %v451
          %v721 = vunpack.c.h.bf16 %v451
          %v722 = vunpack.c.l.bf16 %v452
          %v723 = vunpack.c.h.bf16 %v452
          %v724 = vunpack.c.l.bf16 %v453
          %v725 = vunpack.c.h.bf16 %v453
          %v726 = vlaneseq
          %v727 = vshrl.u32 %v726, 7
          %v728 = vsub.s32 0, %v727
          %v729 = vrot.slane %v486, %v728
          %v730 = vlaneseq
          %v731 = vshrl.u32 %v730, 7
          %v732 = vsub.s32 1, %v731
          %v733 = vrot.slane %v486, %v732
          %v734 = vlaneseq
          %v735 = vshrl.u32 %v734, 7
          %v736 = vsub.s32 0, %v735
          %v737 = vrot.slane %v500, %v736
          %v738 = vlaneseq
          %v739 = vshrl.u32 %v738, 7
          %v740 = vsub.s32 1, %v739
          %v741 = vrot.slane %v500, %v740
          %v742 = vlaneseq
          %v743 = vshrl.u32 %v742, 7
          %v744 = vsub.s32 0, %v743
          %v745 = vrot.slane %v508, %v744
          %v746 = vlaneseq
          %v747 = vshrl.u32 %v746, 7
          %v748 = vsub.s32 1, %v747
          %v749 = vrot.slane %v508, %v748
          %v750 = vlaneseq
          %v751 = vshrl.u32 %v750, 7
          %v752 = vsub.s32 0, %v751
          %v753 = vrot.slane %v510, %v752
          %v754 = vlaneseq
          %v755 = vshrl.u32 %v754, 7
          %v756 = vsub.s32 1, %v755
          %v757 = vrot.slane %v510, %v756
          %v758 = vlaneseq
          %v759 = vshrl.u32 %v758, 7
          %v760 = vsub.s32 0, %v759
          %v761 = vrot.slane %v493, %v760
          %v762 = vlaneseq
          %v763 = vshrl.u32 %v762, 7
          %v764 = vsub.s32 1, %v763
          %v765 = vrot.slane %v493, %v764
          %v766 = vlaneseq
          %v767 = vshrl.u32 %v766, 7
          %v768 = vsub.s32 0, %v767
          %v769 = vrot.slane %v507, %v768
          %v770 = vlaneseq
          %v771 = vshrl.u32 %v770, 7
          %v772 = vsub.s32 1, %v771
          %v773 = vrot.slane %v507, %v772
          %v774 = vlaneseq
          %v775 = vshrl.u32 %v774, 7
          %v776 = vsub.s32 0, %v775
          %v777 = vrot.slane %v509, %v776
          %v778 = vlaneseq
          %v779 = vshrl.u32 %v778, 7
          %v780 = vsub.s32 1, %v779
          %v781 = vrot.slane %v509, %v780
          %v782 = vlaneseq
          %v783 = vshrl.u32 %v782, 7
          %v784 = vsub.s32 0, %v783
          %v785 = vrot.slane %v511, %v784
          %v786 = vlaneseq
          %v787 = vshrl.u32 %v786, 7
          %v788 = vsub.s32 1, %v787
          %v789 = vrot.slane %v511, %v788
          %v790 = vlaneseq
          %v791 = vshrl.u32 %v790, 7
          %v792 = vsub.s32 0, %v791
          %v793 = vrot.slane %v536, %v792
          %v794 = vlaneseq
          %v795 = vshrl.u32 %v794, 7
          %v796 = vsub.s32 1, %v795
          %v797 = vrot.slane %v536, %v796
          %v798 = vlaneseq
          %v799 = vshrl.u32 %v798, 7
          %v800 = vsub.s32 0, %v799
          %v801 = vrot.slane %v550, %v800
          %v802 = vlaneseq
          %v803 = vshrl.u32 %v802, 7
          %v804 = vsub.s32 1, %v803
          %v805 = vrot.slane %v550, %v804
          %v806 = vlaneseq
          %v807 = vshrl.u32 %v806, 7
          %v808 = vsub.s32 0, %v807
          %v809 = vrot.slane %v558, %v808
          %v810 = vlaneseq
          %v811 = vshrl.u32 %v810, 7
          %v812 = vsub.s32 1, %v811
          %v813 = vrot.slane %v558, %v812
          %v814 = vlaneseq
          %v815 = vshrl.u32 %v814, 7
          %v816 = vsub.s32 0, %v815
          %v817 = vrot.slane %v560, %v816
          %v818 = vlaneseq
          %v819 = vshrl.u32 %v818, 7
          %v820 = vsub.s32 1, %v819
          %v821 = vrot.slane %v560, %v820
          %v822 = vlaneseq
          %v823 = vshrl.u32 %v822, 7
          %v824 = vsub.s32 0, %v823
          %v825 = vrot.slane %v543, %v824
          %v826 = vlaneseq
          %v827 = vshrl.u32 %v826, 7
          %v828 = vsub.s32 1, %v827
          %v829 = vrot.slane %v543, %v828
          %v830 = vlaneseq
          %v831 = vshrl.u32 %v830, 7
          %v832 = vsub.s32 0, %v831
          %v833 = vrot.slane %v557, %v832
          %v834 = vlaneseq
          %v835 = vshrl.u32 %v834, 7
          %v836 = vsub.s32 1, %v835
          %v837 = vrot.slane %v557, %v836
          %v838 = vlaneseq
          %v839 = vshrl.u32 %v838, 7
          %v840 = vsub.s32 0, %v839
          %v841 = vrot.slane %v559, %v840
          %v842 = vlaneseq
          %v843 = vshrl.u32 %v842, 7
          %v844 = vsub.s32 1, %v843
          %v845 = vrot.slane %v559, %v844
          %v846 = vlaneseq
          %v847 = vshrl.u32 %v846, 7
          %v848 = vsub.s32 0, %v847
          %v849 = vrot.slane %v561, %v848
          %v850 = vlaneseq
          %v851 = vshrl.u32 %v850, 7
          %v852 = vsub.s32 1, %v851
          %v853 = vrot.slane %v561, %v852
          %v854 = vlaneseq
          %v855 = vshrl.u32 %v854, 7
          %v856 = vsub.s32 0, %v855
          %v857 = vrot.slane %v586, %v856
          %v858 = vlaneseq
          %v859 = vshrl.u32 %v858, 7
          %v860 = vsub.s32 1, %v859
          %v861 = vrot.slane %v586, %v860
          %v862 = vlaneseq
          %v863 = vshrl.u32 %v862, 7
          %v864 = vsub.s32 0, %v863
          %v865 = vrot.slane %v600, %v864
          %v866 = vlaneseq
          %v867 = vshrl.u32 %v866, 7
          %v868 = vsub.s32 1, %v867
          %v869 = vrot.slane %v600, %v868
          %v870 = vlaneseq
          %v871 = vshrl.u32 %v870, 7
          %v872 = vsub.s32 0, %v871
          %v873 = vrot.slane %v608, %v872
          %v874 = vlaneseq
          %v875 = vshrl.u32 %v874, 7
          %v876 = vsub.s32 1, %v875
          %v877 = vrot.slane %v608, %v876
          %v878 = vlaneseq
          %v879 = vshrl.u32 %v878, 7
          %v880 = vsub.s32 0, %v879
          %v881 = vrot.slane %v610, %v880
          %v882 = vlaneseq
          %v883 = vshrl.u32 %v882, 7
          %v884 = vsub.s32 1, %v883
          %v885 = vrot.slane %v610, %v884
          %v886 = vlaneseq
          %v887 = vshrl.u32 %v886, 7
          %v888 = vsub.s32 0, %v887
          %v889 = vrot.slane %v593, %v888
          %v890 = vlaneseq
          %v891 = vshrl.u32 %v890, 7
          %v892 = vsub.s32 1, %v891
          %v893 = vrot.slane %v593, %v892
          %v894 = vlaneseq
          %v895 = vshrl.u32 %v894, 7
          %v896 = vsub.s32 0, %v895
          %v897 = vrot.slane %v607, %v896
          %v898 = vlaneseq
          %v899 = vshrl.u32 %v898, 7
          %v900 = vsub.s32 1, %v899
          %v901 = vrot.slane %v607, %v900
          %v902 = vlaneseq
          %v903 = vshrl.u32 %v902, 7
          %v904 = vsub.s32 0, %v903
          %v905 = vrot.slane %v609, %v904
          %v906 = vlaneseq
          %v907 = vshrl.u32 %v906, 7
          %v908 = vsub.s32 1, %v907
          %v909 = vrot.slane %v609, %v908
          %v910 = vlaneseq
          %v911 = vshrl.u32 %v910, 7
          %v912 = vsub.s32 0, %v911
          %v913 = vrot.slane %v611, %v912
          %v914 = vlaneseq
          %v915 = vshrl.u32 %v914, 7
          %v916 = vsub.s32 1, %v915
          %v917 = vrot.slane %v611, %v916
          %v918 = vlaneseq
          %v919 = vshrl.u32 %v918, 7
          %v920 = vsub.s32 0, %v919
          %v921 = vrot.slane %v636, %v920
          %v922 = vlaneseq
          %v923 = vshrl.u32 %v922, 7
          %v924 = vsub.s32 1, %v923
          %v925 = vrot.slane %v636, %v924
          %v926 = vlaneseq
          %v927 = vshrl.u32 %v926, 7
          %v928 = vsub.s32 0, %v927
          %v929 = vrot.slane %v650, %v928
          %v930 = vlaneseq
          %v931 = vshrl.u32 %v930, 7
          %v932 = vsub.s32 1, %v931
          %v933 = vrot.slane %v650, %v932
          %v934 = vlaneseq
          %v935 = vshrl.u32 %v934, 7
          %v936 = vsub.s32 0, %v935
          %v937 = vrot.slane %v658, %v936
          %v938 = vlaneseq
          %v939 = vshrl.u32 %v938, 7
          %v940 = vsub.s32 1, %v939
          %v941 = vrot.slane %v658, %v940
          %v942 = vlaneseq
          %v943 = vshrl.u32 %v942, 7
          %v944 = vsub.s32 0, %v943
          %v945 = vrot.slane %v660, %v944
          %v946 = vlaneseq
          %v947 = vshrl.u32 %v946, 7
          %v948 = vsub.s32 1, %v947
          %v949 = vrot.slane %v660, %v948
          %v950 = vlaneseq
          %v951 = vshrl.u32 %v950, 7
          %v952 = vsub.s32 0, %v951
          %v953 = vrot.slane %v643, %v952
          %v954 = vlaneseq
          %v955 = vshrl.u32 %v954, 7
          %v956 = vsub.s32 1, %v955
          %v957 = vrot.slane %v643, %v956
          %v958 = vlaneseq
          %v959 = vshrl.u32 %v958, 7
          %v960 = vsub.s32 0, %v959
          %v961 = vrot.slane %v657, %v960
          %v962 = vlaneseq
          %v963 = vshrl.u32 %v962, 7
          %v964 = vsub.s32 1, %v963
          %v965 = vrot.slane %v657, %v964
          %v966 = vlaneseq
          %v967 = vshrl.u32 %v966, 7
          %v968 = vsub.s32 0, %v967
          %v969 = vrot.slane %v659, %v968
          %v970 = vlaneseq
          %v971 = vshrl.u32 %v970, 7
          %v972 = vsub.s32 1, %v971
          %v973 = vrot.slane %v659, %v972
          %v974 = vlaneseq
          %v975 = vshrl.u32 %v974, 7
          %v976 = vsub.s32 0, %v975
          %v977 = vrot.slane %v661, %v976
          %v978 = vlaneseq
          %v979 = vshrl.u32 %v978, 7
          %v980 = vsub.s32 1, %v979
          %v981 = vrot.slane %v661, %v980
          %v1046 = vmul.f32 %v662, %v729
          %v1047 = vmul.f32 %v663, %v733
          %v1048 = vmul.f32 %v664, %v737
          %v1049 = vmul.f32 %v665, %v741
          %v1050 = vmul.f32 %v666, %v745
          %v1051 = vmul.f32 %v667, %v749
          %v1052 = vmul.f32 %v668, %v753
          %v1053 = vmul.f32 %v669, %v757
          %v1054 = vmul.f32 %v670, %v761
          %v1055 = vmul.f32 %v671, %v765
          %v1056 = vmul.f32 %v672, %v769
          %v1057 = vmul.f32 %v673, %v773
          %v1058 = vmul.f32 %v674, %v777
          %v1059 = vmul.f32 %v675, %v781
          %v1060 = vmul.f32 %v676, %v785
          %v1061 = vmul.f32 %v677, %v789
          %v1062 = vmul.f32 %v678, %v793
          %v1063 = vmul.f32 %v679, %v797
          %v1064 = vmul.f32 %v680, %v801
          %v1065 = vmul.f32 %v681, %v805
          %v1066 = vmul.f32 %v682, %v809
          %v1067 = vmul.f32 %v683, %v813
          %v1068 = vmul.f32 %v684, %v817
          %v1069 = vmul.f32 %v685, %v821
          %v1070 = vmul.f32 %v686, %v825
          %v1071 = vmul.f32 %v687, %v829
          %v1072 = vmul.f32 %v688, %v833
          %v1073 = vmul.f32 %v689, %v837
          %v1074 = vmul.f32 %v690, %v841
          %v1075 = vmul.f32 %v691, %v845
          %v1076 = vmul.f32 %v692, %v849
          %v1077 = vmul.f32 %v693, %v853
          %v1078 = vmul.f32 %v694, %v857
          %v1079 = vmul.f32 %v695, %v861
          %v1080 = vmul.f32 %v696, %v865
          %v1081 = vmul.f32 %v697, %v869
          %v1082 = vmul.f32 %v698, %v873
          %v1083 = vmul.f32 %v699, %v877
          %v1084 = vmul.f32 %v700, %v881
          %v1085 = vmul.f32 %v701, %v885
          %v1086 = vmul.f32 %v702, %v889
          %v1087 = vmul.f32 %v703, %v893
          %v1088 = vmul.f32 %v704, %v897
          %v1089 = vmul.f32 %v705, %v901
          %v1090 = vmul.f32 %v706, %v905
          %v1091 = vmul.f32 %v707, %v909
          %v1092 = vmul.f32 %v708, %v913
          %v1093 = vmul.f32 %v709, %v917
          %v1094 = vmul.f32 %v710, %v921
          %v1095 = vmul.f32 %v711, %v925
          %v1096 = vmul.f32 %v712, %v929
          %v1097 = vmul.f32 %v713, %v933
          %v1098 = vmul.f32 %v714, %v937
          %v1099 = vmul.f32 %v715, %v941
          %v1100 = vmul.f32 %v716, %v945
          %v1101 = vmul.f32 %v717, %v949
          %v1102 = vmul.f32 %v718, %v953
          %v1103 = vmul.f32 %v719, %v957
          %v1104 = vmul.f32 %v720, %v961
          %v1105 = vmul.f32 %v721, %v965
          %v1106 = vmul.f32 %v722, %v969
          %v1107 = vmul.f32 %v723, %v973
          %v1108 = vmul.f32 %v724, %v977
          %v1109 = vmul.f32 %v725, %v981
          %v1110 = vpack.c.bf16 %v1048, %v1046
          %v1111 = vpack.c.bf16 %v1049, %v1047
          %v1112 = vpack.c.bf16 %v1052, %v1050
          %v1113 = vpack.c.bf16 %v1053, %v1051
          %v1114 = vpack.c.bf16 %v1056, %v1054
          %v1115 = vpack.c.bf16 %v1057, %v1055
          %v1116 = vpack.c.bf16 %v1060, %v1058
          %v1117 = vpack.c.bf16 %v1061, %v1059
          %v1118 = vpack.c.bf16 %v1064, %v1062
          %v1119 = vpack.c.bf16 %v1065, %v1063
          %v1120 = vpack.c.bf16 %v1068, %v1066
          %v1121 = vpack.c.bf16 %v1069, %v1067
          %v1122 = vpack.c.bf16 %v1072, %v1070
          %v1123 = vpack.c.bf16 %v1073, %v1071
          %v1124 = vpack.c.bf16 %v1076, %v1074
          %v1125 = vpack.c.bf16 %v1077, %v1075
          %v1126 = vpack.c.bf16 %v1080, %v1078
          %v1127 = vpack.c.bf16 %v1081, %v1079
          %v1128 = vpack.c.bf16 %v1084, %v1082
          %v1129 = vpack.c.bf16 %v1085, %v1083
          %v1130 = vpack.c.bf16 %v1088, %v1086
          %v1131 = vpack.c.bf16 %v1089, %v1087
          %v1132 = vpack.c.bf16 %v1092, %v1090
          %v1133 = vpack.c.bf16 %v1093, %v1091
          %v1134 = vpack.c.bf16 %v1096, %v1094
          %v1135 = vpack.c.bf16 %v1097, %v1095
          %v1136 = vpack.c.bf16 %v1100, %v1098
          %v1137 = vpack.c.bf16 %v1101, %v1099
          %v1138 = vpack.c.bf16 %v1104, %v1102
          %v1139 = vpack.c.bf16 %v1105, %v1103
          %v1140 = vpack.c.bf16 %v1108, %v1106
          %v1141 = vpack.c.bf16 %v1109, %v1107
          %v1174 = vunpack.c.l.b16 %v1110
          %v1175 = vunpack.c.l.b16 %v1111
          %v1176 = vunpack.c.h.b16 %v1110
          %v1177 = vunpack.c.h.b16 %v1111
          %v1178 = vunpack.c.l.b16 %v1112
          %v1179 = vunpack.c.l.b16 %v1113
          %v1180 = vunpack.c.h.b16 %v1112
          %v1181 = vunpack.c.h.b16 %v1113
          %v1182 = vunpack.c.l.b16 %v1114
          %v1183 = vunpack.c.l.b16 %v1115
          %v1184 = vunpack.c.h.b16 %v1114
          %v1185 = vunpack.c.h.b16 %v1115
          %v1186 = vunpack.c.l.b16 %v1116
          %v1187 = vunpack.c.l.b16 %v1117
          %v1188 = vunpack.c.h.b16 %v1116
          %v1189 = vunpack.c.h.b16 %v1117
          %v1190 = vunpack.c.l.b16 %v1118
          %v1191 = vunpack.c.l.b16 %v1119
          %v1192 = vunpack.c.h.b16 %v1118
          %v1193 = vunpack.c.h.b16 %v1119
          %v1194 = vunpack.c.l.b16 %v1120
          %v1195 = vunpack.c.l.b16 %v1121
          %v1196 = vunpack.c.h.b16 %v1120
          %v1197 = vunpack.c.h.b16 %v1121
          %v1198 = vunpack.c.l.b16 %v1122
          %v1199 = vunpack.c.l.b16 %v1123
          %v1200 = vunpack.c.h.b16 %v1122
          %v1201 = vunpack.c.h.b16 %v1123
          %v1202 = vunpack.c.l.b16 %v1124
          %v1203 = vunpack.c.l.b16 %v1125
          %v1204 = vunpack.c.h.b16 %v1124
          %v1205 = vunpack.c.h.b16 %v1125
          %v1206 = vunpack.c.l.b16 %v1126
          %v1207 = vunpack.c.l.b16 %v1127
          %v1208 = vunpack.c.h.b16 %v1126
          %v1209 = vunpack.c.h.b16 %v1127
          %v1210 = vunpack.c.l.b16 %v1128
          %v1211 = vunpack.c.l.b16 %v1129
          %v1212 = vunpack.c.h.b16 %v1128
          %v1213 = vunpack.c.h.b16 %v1129
          %v1214 = vunpack.c.l.b16 %v1130
          %v1215 = vunpack.c.l.b16 %v1131
          %v1216 = vunpack.c.h.b16 %v1130
          %v1217 = vunpack.c.h.b16 %v1131
          %v1218 = vunpack.c.l.b16 %v1132
          %v1219 = vunpack.c.l.b16 %v1133
          %v1220 = vunpack.c.h.b16 %v1132
          %v1221 = vunpack.c.h.b16 %v1133
          %v1222 = vunpack.c.l.b16 %v1134
          %v1223 = vunpack.c.l.b16 %v1135
          %v1224 = vunpack.c.h.b16 %v1134
          %v1225 = vunpack.c.h.b16 %v1135
          %v1226 = vunpack.c.l.b16 %v1136
          %v1227 = vunpack.c.l.b16 %v1137
          %v1228 = vunpack.c.h.b16 %v1136
          %v1229 = vunpack.c.h.b16 %v1137
          %v1230 = vunpack.c.l.b16 %v1138
          %v1231 = vunpack.c.l.b16 %v1139
          %v1232 = vunpack.c.h.b16 %v1138
          %v1233 = vunpack.c.h.b16 %v1139
          %v1234 = vunpack.c.l.b16 %v1140
          %v1235 = vunpack.c.l.b16 %v1141
          %v1236 = vunpack.c.h.b16 %v1140
          %v1237 = vunpack.c.h.b16 %v1141
          %v1238 = vpack.c.b16 %v1175, %v1174
          %v1239 = vpack.c.b16 %v1177, %v1176
          %v1240 = vpack.c.b16 %v1179, %v1178
          %v1241 = vpack.c.b16 %v1181, %v1180
          %v1242 = vpack.c.b16 %v1183, %v1182
          %v1243 = vpack.c.b16 %v1185, %v1184
          %v1244 = vpack.c.b16 %v1187, %v1186
          %v1245 = vpack.c.b16 %v1189, %v1188
          %v1246 = vpack.c.b16 %v1191, %v1190
          %v1247 = vpack.c.b16 %v1193, %v1192
          %v1248 = vpack.c.b16 %v1195, %v1194
          %v1249 = vpack.c.b16 %v1197, %v1196
          %v1250 = vpack.c.b16 %v1199, %v1198
          %v1251 = vpack.c.b16 %v1201, %v1200
          %v1252 = vpack.c.b16 %v1203, %v1202
          %v1253 = vpack.c.b16 %v1205, %v1204
          %v1254 = vpack.c.b16 %v1207, %v1206
          %v1255 = vpack.c.b16 %v1209, %v1208
          %v1256 = vpack.c.b16 %v1211, %v1210
          %v1257 = vpack.c.b16 %v1213, %v1212
          %v1258 = vpack.c.b16 %v1215, %v1214
          %v1259 = vpack.c.b16 %v1217, %v1216
          %v1260 = vpack.c.b16 %v1219, %v1218
          %v1261 = vpack.c.b16 %v1221, %v1220
          %v1262 = vpack.c.b16 %v1223, %v1222
          %v1263 = vpack.c.b16 %v1225, %v1224
          %v1264 = vpack.c.b16 %v1227, %v1226
          %v1265 = vpack.c.b16 %v1229, %v1228
          %v1266 = vpack.c.b16 %v1231, %v1230
          %v1267 = vpack.c.b16 %v1233, %v1232
          %v1268 = vpack.c.b16 %v1235, %v1234
          %v1269 = vpack.c.b16 %v1237, %v1236
          %vm1302 = vcmask 1043456
          %vm1303 = vcmask 261124
          %vm1304 = vmor %vm1303, %vm1302
          %1305 = vst.msk [vmem:[#allocation4] sm:$0xff] %vm1304, %v1238
          %1306 = vst.msk [vmem:[#allocation4 + $0x8] sm:$0xff] %vm1304, %v1239
          %1307 = vst.msk [vmem:[#allocation4 + $0x10] sm:$0xff] %vm1304, %v1240
          %1308 = vst.msk [vmem:[#allocation4 + $0x18] sm:$0xff] %vm1304, %v1241
          %1309 = vst.msk [vmem:[#allocation4 + $0x20] sm:$0xff] %vm1304, %v1242
          %1310 = vst.msk [vmem:[#allocation4 + $0x28] sm:$0xff] %vm1304, %v1243
          %1311 = vst.msk [vmem:[#allocation4 + $0x30] sm:$0xff] %vm1304, %v1244
          %1312 = vst.msk [vmem:[#allocation4 + $0x38] sm:$0xff] %vm1304, %v1245
          %1313 = vst.msk [vmem:[#allocation4 + $0x40] sm:$0xff] %vm1304, %v1246
          %1314 = vst.msk [vmem:[#allocation4 + $0x48] sm:$0xff] %vm1304, %v1247
          %1315 = vst.msk [vmem:[#allocation4 + $0x50] sm:$0xff] %vm1304, %v1248
          %1316 = vst.msk [vmem:[#allocation4 + $0x58] sm:$0xff] %vm1304, %v1249
          %1317 = vst.msk [vmem:[#allocation4 + $0x60] sm:$0xff] %vm1304, %v1250
          %1318 = vst.msk [vmem:[#allocation4 + $0x68] sm:$0xff] %vm1304, %v1251
          %1319 = vst.msk [vmem:[#allocation4 + $0x70] sm:$0xff] %vm1304, %v1252
          %1320 = vst.msk [vmem:[#allocation4 + $0x78] sm:$0xff] %vm1304, %v1253
          %1321 = vst.msk [vmem:[#allocation4 + $0x80] sm:$0xff] %vm1304, %v1254
          %1322 = vst.msk [vmem:[#allocation4 + $0x88] sm:$0xff] %vm1304, %v1255
          %1323 = vst.msk [vmem:[#allocation4 + $0x90] sm:$0xff] %vm1304, %v1256
          %1324 = vst.msk [vmem:[#allocation4 + $0x98] sm:$0xff] %vm1304, %v1257
          %1325 = vst.msk [vmem:[#allocation4 + $0xa0] sm:$0xff] %vm1304, %v1258
          %1326 = vst.msk [vmem:[#allocation4 + $0xa8] sm:$0xff] %vm1304, %v1259
          %1327 = vst.msk [vmem:[#allocation4 + $0xb0] sm:$0xff] %vm1304, %v1260
          %1328 = vst.msk [vmem:[#allocation4 + $0xb8] sm:$0xff] %vm1304, %v1261
          %1329 = vst.msk [vmem:[#allocation4 + $0xc0] sm:$0xff] %vm1304, %v1262
          %1330 = vst.msk [vmem:[#allocation4 + $0xc8] sm:$0xff] %vm1304, %v1263
          %1331 = vst.msk [vmem:[#allocation4 + $0xd0] sm:$0xff] %vm1304, %v1264
          %1332 = vst.msk [vmem:[#allocation4 + $0xd8] sm:$0xff] %vm1304, %v1265
          %1333 = vst.msk [vmem:[#allocation4 + $0xe0] sm:$0xff] %vm1304, %v1266
          %1334 = vst.msk [vmem:[#allocation4 + $0xe8] sm:$0xff] %vm1304, %v1267
          %1335 = vst.msk [vmem:[#allocation4 + $0xf0] sm:$0xff] %vm1304, %v1268
          %1336 = vst.msk [vmem:[#allocation4 + $0xf8] sm:$0xff] %vm1304, %v1269
        $region48: #{tpu_custom_call.1} parent=39 // pred_fallthru
          _
        %v1337 = vld [vmem:[%s237] sm:$0x3]
        %v1338 = vld [vmem:[#allocation4] sm:$0xff]
        %v1339 = vld [vmem:[#allocation4 + $0x8] sm:$0xff]
        %v1340 = vld [vmem:[#allocation4 + $0x10] sm:$0xff]
        %v1341 = vld [vmem:[#allocation4 + $0x18] sm:$0xff]
        %v1342 = vld [vmem:[#allocation4 + $0x20] sm:$0xff]
        %v1343 = vld [vmem:[#allocation4 + $0x28] sm:$0xff]
        %v1344 = vld [vmem:[#allocation4 + $0x30] sm:$0xff]
        %v1345 = vld [vmem:[#allocation4 + $0x38] sm:$0xff]
        %v1346 = vld [vmem:[#allocation4 + $0x40] sm:$0xff]
        %v1347 = vld [vmem:[#allocation4 + $0x48] sm:$0xff]
        %v1348 = vld [vmem:[#allocation4 + $0x50] sm:$0xff]
        %v1349 = vld [vmem:[#allocation4 + $0x58] sm:$0xff]
        %v1350 = vld [vmem:[#allocation4 + $0x60] sm:$0xff]
        %v1351 = vld [vmem:[#allocation4 + $0x68] sm:$0xff]
        %v1352 = vld [vmem:[#allocation4 + $0x70] sm:$0xff]
        %v1353 = vld [vmem:[#allocation4 + $0x78] sm:$0xff]
        %v1354 = vld [vmem:[#allocation4 + $0x80] sm:$0xff]
        %v1355 = vld [vmem:[#allocation4 + $0x88] sm:$0xff]
        %v1356 = vld [vmem:[#allocation4 + $0x90] sm:$0xff]
        %v1357 = vld [vmem:[#allocation4 + $0x98] sm:$0xff]
        %v1358 = vld [vmem:[#allocation4 + $0xa0] sm:$0xff]
        %v1359 = vld [vmem:[#allocation4 + $0xa8] sm:$0xff]
        %v1360 = vld [vmem:[#allocation4 + $0xb0] sm:$0xff]
        %v1361 = vld [vmem:[#allocation4 + $0xb8] sm:$0xff]
        %v1362 = vld [vmem:[#allocation4 + $0xc0] sm:$0xff]
        %v1363 = vld [vmem:[#allocation4 + $0xc8] sm:$0xff]
        %v1364 = vld [vmem:[#allocation4 + $0xd0] sm:$0xff]
        %v1365 = vld [vmem:[#allocation4 + $0xd8] sm:$0xff]
        %v1366 = vld [vmem:[#allocation4 + $0xe0] sm:$0xff]
        %v1367 = vld [vmem:[#allocation4 + $0xe8] sm:$0xff]
        %v1368 = vld [vmem:[#allocation4 + $0xf0] sm:$0xff]
        %v1369 = vld [vmem:[#allocation4 + $0xf8] sm:$0xff]
        %v1372 = vunpack.c.l.s4 1966171168
        %v1373 = vunpack.c.0.s8 %v1372
        %v1374 = vlaneseq
        %v1375 = vshrl.u32 %v1374, 7
        %v1376 = vsub.s32 %v1373, %v1375
        %v1377 = vrot.slane %v1337, %v1376
        %v1378 = vcombine.high %v1377, %v1377
        %v1380 = vunpack.c.l.s4 1966171168
        %v1381 = vunpack.c.0.s8 %v1380
        %v1382 = vlaneseq
        %v1383 = vshrl.u32 %v1382, 7
        %v1384 = vsub.s32 %v1381, %v1383
        %v1385 = vrot.slane %v1377, %v1384
        %v1387 = vunpack.c.l.s4 1966171168
        %v1388 = vunpack.c.0.s8 %v1387
        %v1389 = vlaneseq
        %v1390 = vshrl.u32 %v1389, 7
        %v1391 = vsub.s32 %v1388, %v1390
        %v1392 = vrot.slane %v1378, %v1391
        %v1427 = vunpack.c.l.b16 %v1338
        %v1428 = vunpack.c.h.b16 %v1338
        %v1429 = vunpack.c.l.b16 %v1339
        %v1430 = vunpack.c.h.b16 %v1339
        %v1431 = vunpack.c.l.b16 %v1340
        %v1432 = vunpack.c.h.b16 %v1340
        %v1433 = vunpack.c.l.b16 %v1341
        %v1434 = vunpack.c.h.b16 %v1341
        %v1435 = vunpack.c.l.b16 %v1342
        %v1436 = vunpack.c.h.b16 %v1342
        %v1437 = vunpack.c.l.b16 %v1343
        %v1438 = vunpack.c.h.b16 %v1343
        %v1439 = vunpack.c.l.b16 %v1344
        %v1440 = vunpack.c.h.b16 %v1344
        %v1441 = vunpack.c.l.b16 %v1345
        %v1442 = vunpack.c.h.b16 %v1345
        %v1443 = vunpack.c.l.b16 %v1346
        %v1444 = vunpack.c.h.b16 %v1346
        %v1445 = vunpack.c.l.b16 %v1347
        %v1446 = vunpack.c.h.b16 %v1347
        %v1447 = vunpack.c.l.b16 %v1348
        %v1448 = vunpack.c.h.b16 %v1348
        %v1449 = vunpack.c.l.b16 %v1349
        %v1450 = vunpack.c.h.b16 %v1349
        %v1451 = vunpack.c.l.b16 %v1350
        %v1452 = vunpack.c.h.b16 %v1350
        %v1453 = vunpack.c.l.b16 %v1351
        %v1454 = vunpack.c.h.b16 %v1351
        %v1455 = vunpack.c.l.b16 %v1352
        %v1456 = vunpack.c.h.b16 %v1352
        %v1457 = vunpack.c.l.b16 %v1353
        %v1458 = vunpack.c.h.b16 %v1353
        %v1459 = vunpack.c.l.b16 %v1354
        %v1460 = vunpack.c.h.b16 %v1354
        %v1461 = vunpack.c.l.b16 %v1355
        %v1462 = vunpack.c.h.b16 %v1355
        %v1463 = vunpack.c.l.b16 %v1356
        %v1464 = vunpack.c.h.b16 %v1356
        %v1465 = vunpack.c.l.b16 %v1357
        %v1466 = vunpack.c.h.b16 %v1357
        %v1467 = vunpack.c.l.b16 %v1358
        %v1468 = vunpack.c.h.b16 %v1358
        %v1469 = vunpack.c.l.b16 %v1359
        %v1470 = vunpack.c.h.b16 %v1359
        %v1471 = vunpack.c.l.b16 %v1360
        %v1472 = vunpack.c.h.b16 %v1360
        %v1473 = vunpack.c.l.b16 %v1361
        %v1474 = vunpack.c.h.b16 %v1361
        %v1475 = vunpack.c.l.b16 %v1362
        %v1476 = vunpack.c.h.b16 %v1362
        %v1477 = vunpack.c.l.b16 %v1363
        %v1478 = vunpack.c.h.b16 %v1363
        %v1479 = vunpack.c.l.b16 %v1364
        %v1480 = vunpack.c.h.b16 %v1364
        %v1481 = vunpack.c.l.b16 %v1365
        %v1482 = vunpack.c.h.b16 %v1365
        %v1483 = vunpack.c.l.b16 %v1366
        %v1484 = vunpack.c.h.b16 %v1366
        %v1485 = vunpack.c.l.b16 %v1367
        %v1486 = vunpack.c.h.b16 %v1367
        %v1487 = vunpack.c.l.b16 %v1368
        %v1488 = vunpack.c.h.b16 %v1368
        %v1489 = vunpack.c.l.b16 %v1369
        %v1490 = vunpack.c.h.b16 %v1369
        %v1491 = vpack.c.b16 %v1429, %v1427
        %v1492 = vpack.c.b16 %v1430, %v1428
        %v1493 = vpack.c.b16 %v1433, %v1431
        %v1494 = vpack.c.b16 %v1434, %v1432
        %v1495 = vpack.c.b16 %v1437, %v1435
        %v1496 = vpack.c.b16 %v1438, %v1436
        %v1497 = vpack.c.b16 %v1441, %v1439
        %v1498 = vpack.c.b16 %v1442, %v1440
        %v1499 = vpack.c.b16 %v1445, %v1443
        %v1500 = vpack.c.b16 %v1446, %v1444
        %v1501 = vpack.c.b16 %v1449, %v1447
        %v1502 = vpack.c.b16 %v1450, %v1448
        %v1503 = vpack.c.b16 %v1453, %v1451
        %v1504 = vpack.c.b16 %v1454, %v1452
        %v1505 = vpack.c.b16 %v1457, %v1455
        %v1506 = vpack.c.b16 %v1458, %v1456
        %v1507 = vpack.c.b16 %v1461, %v1459
        %v1508 = vpack.c.b16 %v1462, %v1460
        %v1509 = vpack.c.b16 %v1465, %v1463
        %v1510 = vpack.c.b16 %v1466, %v1464
        %v1511 = vpack.c.b16 %v1469, %v1467
        %v1512 = vpack.c.b16 %v1470, %v1468
        %v1513 = vpack.c.b16 %v1473, %v1471
        %v1514 = vpack.c.b16 %v1474, %v1472
        %v1515 = vpack.c.b16 %v1477, %v1475
        %v1516 = vpack.c.b16 %v1478, %v1476
        %v1517 = vpack.c.b16 %v1481, %v1479
        %v1518 = vpack.c.b16 %v1482, %v1480
        %v1519 = vpack.c.b16 %v1485, %v1483
        %v1520 = vpack.c.b16 %v1486, %v1484
        %v1521 = vpack.c.b16 %v1489, %v1487
        %v1522 = vpack.c.b16 %v1490, %v1488
        %1555 = vmatprep.subr.bf16.mxu0 %v1506
        %1556 = vmatpush1.bf16.msra.mxu0 %v1505
        %1557 = vmatprep.subr.bf16.mxu0 %v1504
        %1558 = vmatpush1.bf16.msra.mxu0 %v1503
        %1559 = vmatprep.subr.bf16.mxu0 %v1502
        %1560 = vmatpush1.bf16.msra.mxu0 %v1501
        %1561 = vmatprep.subr.bf16.mxu0 %v1500
        %1562 = vmatpush1.bf16.msra.mxu0 %v1499
        %1563 = vmatprep.subr.bf16.mxu0 %v1498
        %1564 = vmatpush1.bf16.msra.mxu0 %v1497
        %1565 = vmatprep.subr.bf16.mxu0 %v1496
        %1566 = vmatpush1.bf16.msra.mxu0 %v1495
        %1567 = vmatprep.subr.bf16.mxu0 %v1494
        %1568 = vmatpush1.bf16.msra.mxu0 %v1493
        %1569 = vmatprep.subr.bf16.mxu0 %v1492
        %1570 = vmatpush1.bf16.msra.mxu0 %v1491
        %1571 = vmatprep.subr.bf16.mxu0 %v1522
        %1572 = vmatpush2.bf16.msra.mxu0 %v1521
        %1573 = vmatprep.subr.bf16.mxu0 %v1520
        %1574 = vmatpush2.bf16.msra.mxu0 %v1519
        %1575 = vmatprep.subr.bf16.mxu0 %v1518
        %1576 = vmatpush2.bf16.msra.mxu0 %v1517
        %1577 = vmatprep.subr.bf16.mxu0 %v1516
        %1578 = vmatpush2.bf16.msra.mxu0 %v1515
        %1579 = vmatprep.subr.bf16.mxu0 %v1514
        %1580 = vmatpush2.bf16.msra.mxu0 %v1513
        %1581 = vmatprep.subr.bf16.mxu0 %v1512
        %1582 = vmatpush2.bf16.msra.mxu0 %v1511
        %1583 = vmatprep.subr.bf16.mxu0 %v1510
        %1584 = vmatpush2.bf16.msra.mxu0 %v1509
        %1585 = vmatprep.subr.bf16.mxu0 %v1508
        %1586 = vmatpush2.bf16.msra.mxu0 %v1507
        %1587 = vmatprep.mubr.bf16.mxu0 %v1392
        %1588 = vmatmul.mubr.bf16.gmra.mxu0 %v1385
        %v1589 = vpop.f32.mrf.mxu0
        %v1590 = vadd.f32 0.0, %v1589
        %v1591 = vpop.f32.mrf.mxu0
        %v1592 = vadd.f32 0.0, %v1591
        %v1593 = vpop.f32.mrf.mxu0
        %v1594 = vpop.f32.mrf.mxu0
        %1595 = vdwg.mxu0
        %v1596 = vld [vmem:[%s4] sm:$0xff]
        %v1597 = vld [vmem:[%s4 + $0x8] sm:$0xff]
        %v1598 = vld [vmem:[%s4 + $0x10] sm:$0xff]
        %v1599 = vld [vmem:[%s4 + $0x18] sm:$0xff]
        %v1600 = vld [vmem:[%s4 + $0x20] sm:$0xff]
        %v1601 = vld [vmem:[%s4 + $0x28] sm:$0xff]
        %v1602 = vld [vmem:[%s4 + $0x30] sm:$0xff]
        %v1603 = vld [vmem:[%s4 + $0x38] sm:$0xff]
        %v1604 = vld [vmem:[%s4 + $0x40] sm:$0xff]
        %v1605 = vld [vmem:[%s4 + $0x48] sm:$0xff]
        %v1606 = vld [vmem:[%s4 + $0x50] sm:$0xff]
        %v1607 = vld [vmem:[%s4 + $0x58] sm:$0xff]
        %v1608 = vld [vmem:[%s4 + $0x60] sm:$0xff]
        %v1609 = vld [vmem:[%s4 + $0x68] sm:$0xff]
        %v1610 = vld [vmem:[%s4 + $0x70] sm:$0xff]
        %v1611 = vld [vmem:[%s4 + $0x78] sm:$0xff]
        %v1612 = vld [vmem:[%s4 + $0x80] sm:$0xff]
        %v1613 = vld [vmem:[%s4 + $0x88] sm:$0xff]
        %v1614 = vld [vmem:[%s4 + $0x90] sm:$0xff]
        %v1615 = vld [vmem:[%s4 + $0x98] sm:$0xff]
        %v1616 = vmul.f32 %v1590, %v1590
        %v1617 = vmul.f32 %v1592, %v1592
        %vm1618 = vcmask 261120
        %v1620 = vsel %vm1618, %v1617, 0
        %1622 = vmatprep.subr.mxu0 0.0
        %1623 = vmatpush1.msra.mxu0 %v1611
        %1624 = vmatprep.subr.mxu0 0.0
        %1625 = vmatpush1.msra.mxu0 %v1610
        %1626 = vmatprep.subr.mxu0 0.0
        %1627 = vmatpush1.msra.mxu0 %v1609
        %1628 = vmatprep.subr.mxu0 0.0
        %1629 = vmatpush1.msra.mxu0 %v1608
        %1630 = vmatprep.subr.mxu0 0.0
        %1631 = vmatpush1.msra.mxu0 %v1607
        %1632 = vmatprep.subr.mxu0 0.0
        %1633 = vmatpush1.msra.mxu0 %v1606
        %1634 = vmatprep.subr.mxu0 0.0
        %1635 = vmatpush1.msra.mxu0 %v1605
        %1636 = vmatprep.subr.mxu0 0.0
        %1637 = vmatpush1.msra.mxu0 %v1604
        %1638 = vmatprep.subr.mxu0 0.0
        %1639 = vmatpush1.msra.mxu0 %v1603
        %1640 = vmatprep.subr.mxu0 0.0
        %1641 = vmatpush1.msra.mxu0 %v1602
        %1642 = vmatprep.subr.mxu0 0.0
        %1643 = vmatpush1.msra.mxu0 %v1601
        %1644 = vmatprep.subr.mxu0 0.0
        %1645 = vmatpush1.msra.mxu0 %v1600
        %1646 = vmatprep.subr.mxu0 0.0
        %1647 = vmatpush1.msra.mxu0 %v1599
        %1648 = vmatprep.subr.mxu0 0.0
        %1649 = vmatpush1.msra.mxu0 %v1598
        %1650 = vmatprep.subr.mxu0 0.0
        %1651 = vmatpush1.msra.mxu0 %v1597
        %1652 = vmatprep.subr.mxu0 0.0
        %1653 = vmatpush1.msra.mxu0 %v1596
        %1654 = vmatprep.subr.mxu0 0.0
        %1655 = vmatpush2.msra.mxu0 0.0
        %1656 = vmatprep.subr.mxu0 0.0
        %1657 = vmatpush2.msra.mxu0 0.0
        %1658 = vmatprep.subr.mxu0 0.0
        %1659 = vmatpush2.msra.mxu0 0.0
        %1660 = vmatprep.subr.mxu0 0.0
        %1661 = vmatpush2.msra.mxu0 0.0
        %1662 = vmatprep.subr.mxu0 0.0
        %1663 = vmatpush2.msra.mxu0 0.0
        %1664 = vmatprep.subr.mxu0 0.0
        %1665 = vmatpush2.msra.mxu0 0.0
        %1666 = vmatprep.subr.mxu0 0.0
        %1667 = vmatpush2.msra.mxu0 0.0
        %1668 = vmatprep.subr.mxu0 0.0
        %1669 = vmatpush2.msra.mxu0 0.0
        %1670 = vmatprep.subr.mxu0 0.0
        %1671 = vmatpush2.msra.mxu0 0.0
        %1672 = vmatprep.subr.mxu0 0.0
        %1673 = vmatpush2.msra.mxu0 0.0
        %1674 = vmatprep.subr.mxu0 0.0
        %1675 = vmatpush2.msra.mxu0 0.0
        %1676 = vmatprep.subr.mxu0 0.0
        %1677 = vmatpush2.msra.mxu0 0.0
        %1678 = vmatprep.subr.mxu0 0.0
        %1679 = vmatpush2.msra.mxu0 %v1615
        %1680 = vmatprep.subr.mxu0 0.0
        %1681 = vmatpush2.msra.mxu0 %v1614
        %1682 = vmatprep.subr.mxu0 0.0
        %1683 = vmatpush2.msra.mxu0 %v1613
        %1684 = vmatprep.subr.mxu0 0.0
        %1685 = vmatpush2.msra.mxu0 %v1612
        %1686 = vmatprep.mubr.f32.mxu0 %v1620
        %1687 = vmatmul.mubr.f32.gmra.mxu0 %v1616
        %v1688 = vpop.f32.mrf.mxu0
        %v1689 = vadd.f32 0.0, %v1688
        %v1690 = vpop.f32.mrf.mxu0
        %1691 = vdwg.mxu0
        %v1692 = vrsqrt.pop %v1689
        %v1693 = vmul.f32 %v1689, %v1692
        %vm1694 = vcmp.eq.f32.partialorder %v1689, inf
        %v1695 = vsel %vm1694, %v1689, %v1693
        %vm1696 = vcmp.eq.f32.partialorder %v1689, 0.0
        %v1697 = vand.u32 %v1689, 2147483648
        %v1698 = vsel %vm1696, %v1697, %v1695
        %v1699 = vadd.f32 %v1689, 1.0
        %v1700 = vrcp.pop %v1699
        %v1701 = vmul.f32 %v1698, %v1700
        %v1702 = vld [vmem:[%s3] sm:$0xff]
        %v1703 = vld [vmem:[%s3 + $0x8] sm:$0xff]
        %v1704 = vld [vmem:[%s3 + $0x10] sm:$0x3]
        %v1705 = vld [vmem:[%s3 + $0x18] sm:$0x3]
        %vm1706 = vcmask 80896
        %v1708 = vsel %vm1706, %v1701, 0
        %vm1710 = vcmask 1041408
        %v1712 = vsel %vm1710, %v1704, 0
        %v1715 = vsel %vm1710, %v1705, 0
        %1717 = vmatprep.subr.mxu0 0.0
        %1718 = vmatpush1.msra.mxu0 0.0
        %1719 = vmatprep.subr.mxu0 0.0
        %1720 = vmatpush1.msra.mxu0 0.0
        %1721 = vmatprep.subr.mxu0 0.0
        %1722 = vmatpush1.msra.mxu0 0.0
        %1723 = vmatprep.subr.mxu0 0.0
        %1724 = vmatpush1.msra.mxu0 0.0
        %1725 = vmatprep.subr.mxu0 0.0
        %1726 = vmatpush1.msra.mxu0 0.0
        %1727 = vmatprep.subr.mxu0 0.0
        %1728 = vmatpush1.msra.mxu0 0.0
        %1729 = vmatprep.subr.mxu0 0.0
        %1730 = vmatpush1.msra.mxu0 0.0
        %1731 = vmatprep.subr.mxu0 0.0
        %1732 = vmatpush1.msra.mxu0 0.0
        %1733 = vmatprep.subr.mxu0 0.0
        %1734 = vmatpush1.msra.mxu0 0.0
        %1735 = vmatprep.subr.mxu0 0.0
        %1736 = vmatpush1.msra.mxu0 0.0
        %1737 = vmatprep.subr.mxu0 0.0
        %1738 = vmatpush1.msra.mxu0 0.0
        %1739 = vmatprep.subr.mxu0 0.0
        %1740 = vmatpush1.msra.mxu0 0.0
        %1741 = vmatprep.subr.mxu0 0.0
        %1742 = vmatpush1.msra.mxu0 0.0
        %1743 = vmatprep.subr.mxu0 0.0
        %1744 = vmatpush1.msra.mxu0 0.0
        %1745 = vmatprep.subr.mxu0 %v1715
        %1746 = vmatpush1.msra.mxu0 %v1712
        %1747 = vmatprep.subr.mxu0 %v1703
        %1748 = vmatpush1.msra.mxu0 %v1702
        %1749 = vmatprep.subr.mxu0 0.0
        %1750 = vmatpush2.msra.mxu0 0.0
        %1751 = vmatprep.subr.mxu0 0.0
        %1752 = vmatpush2.msra.mxu0 0.0
        %1753 = vmatprep.subr.mxu0 0.0
        %1754 = vmatpush2.msra.mxu0 0.0
        %1755 = vmatprep.subr.mxu0 0.0
        %1756 = vmatpush2.msra.mxu0 0.0
        %1757 = vmatprep.subr.mxu0 0.0
        %1758 = vmatpush2.msra.mxu0 0.0
        %1759 = vmatprep.subr.mxu0 0.0
        %1760 = vmatpush2.msra.mxu0 0.0
        %1761 = vmatprep.subr.mxu0 0.0
        %1762 = vmatpush2.msra.mxu0 0.0
        %1763 = vmatprep.subr.mxu0 0.0
        %1764 = vmatpush2.msra.mxu0 0.0
        %1765 = vmatprep.subr.mxu0 0.0
        %1766 = vmatpush2.msra.mxu0 0.0
        %1767 = vmatprep.subr.mxu0 0.0
        %1768 = vmatpush2.msra.mxu0 0.0
        %1769 = vmatprep.subr.mxu0 0.0
        %1770 = vmatpush2.msra.mxu0 0.0
        %1771 = vmatprep.subr.mxu0 0.0
        %1772 = vmatpush2.msra.mxu0 0.0
        %1773 = vmatprep.subr.mxu0 0.0
        %1774 = vmatpush2.msra.mxu0 0.0
        %1775 = vmatprep.subr.mxu0 0.0
        %1776 = vmatpush2.msra.mxu0 0.0
        %1777 = vmatprep.subr.mxu0 0.0
        %1778 = vmatpush2.msra.mxu0 0.0
        %1779 = vmatprep.subr.mxu0 0.0
        %1780 = vmatpush2.msra.mxu0 0.0
        %1781 = vmatprep.mubr.f32.mxu0 0.0
        %1782 = vmatmul.mubr.f32.gmra.mxu0 %v1708
        %v1783 = vpop.f32.mrf.mxu0
        %v1784 = vadd.f32 0.0, %v1783
        %v1785 = vpop.f32.mrf.mxu0
        %v1786 = vadd.f32 0.0, %v1785
        %1787 = vdwg.mxu0
        %v1788 = vmul.f32 %v1590, %v1784
        %v1789 = vmul.f32 %v1592, %v1786
        %p1790 = scmp.eq.s32.totalorder %s21, 2
        // Predicated region
        $region49: #{tpu_custom_call.1} parent=39 // pred_check
          %p1791 = pneg %p1790
        $region50: #{tpu_custom_call.1} parent=39 // pred_check_branch
          %1793 = sbr.rel (%p1791) target = $region52
        $region51: #{tpu_custom_call.1} parent=39 // pred_region
          %v1796 = vcombine.low %v1788, %v1789
          %v1798 = vunpack.c.l.s4 1983009808
          %v1799 = vunpack.c.0.s8 %v1798
          %v1800 = vlaneseq
          %v1801 = vshrl.u32 %v1800, 7
          %v1802 = vsub.s32 %v1799, %v1801
          %v1803 = vrot.slane %v1796, %v1802
          %vm1805 = vcmask 257026
          %vm1806 = vmor %vm1805, %vm1710
          %1807 = vst.msk [vmem:[#allocation5] sm:$0xf] %vm1806, %v1803
        $region52: #{tpu_custom_call.1} parent=39 // pred_fallthru
          _
        %p1808 = scmp.lt.s32.totalorder %s21, 2
        // Predicated region
        $region53: #{tpu_custom_call.1} parent=39 // pred_check
          %p1809 = pneg %p1808
        $region54: #{tpu_custom_call.1} parent=39 // pred_check_branch
          %1811 = sbr.rel (%p1809) target = $region56
        $region55: #{tpu_custom_call.1} parent=39 // pred_region
          %v1812 = vld [vmem:[%s241] sm:$0xf]
          %v1813 = vld [vmem:[%s241 + $0x4] sm:$0xf]
          %v1814 = vld [vmem:[%s241 + $0x8] sm:$0xf]
          %v1815 = vld [vmem:[%s241 + $0xc] sm:$0xf]
          %v1816 = vld [vmem:[%s241 + $0x10] sm:$0xf]
          %v1817 = vld [vmem:[%s241 + $0x14] sm:$0xf]
          %v1818 = vld [vmem:[%s241 + $0x18] sm:$0xf]
          %v1819 = vld [vmem:[%s241 + $0x1c] sm:$0xf]
          %v1820 = vld [vmem:[%s241 + $0x20] sm:$0xf]
          %v1821 = vld [vmem:[%s241 + $0x24] sm:$0xf]
          %v1822 = vld [vmem:[%s241 + $0x28] sm:$0xf]
          %v1823 = vld [vmem:[%s241 + $0x2c] sm:$0xf]
          %v1824 = vld [vmem:[%s241 + $0x30] sm:$0xf]
          %v1825 = vld [vmem:[%s241 + $0x34] sm:$0xf]
          %v1826 = vld [vmem:[%s241 + $0x38] sm:$0xf]
          %v1827 = vld [vmem:[%s241 + $0x3c] sm:$0xf]
          %v1828 = vld [vmem:[%s241 + $0x40] sm:$0xf]
          %v1829 = vld [vmem:[%s241 + $0x44] sm:$0xf]
          %v1830 = vld [vmem:[%s241 + $0x48] sm:$0xf]
          %v1831 = vld [vmem:[%s241 + $0x4c] sm:$0xf]
          %v1832 = vld [vmem:[%s241 + $0x50] sm:$0xf]
          %v1833 = vld [vmem:[%s241 + $0x54] sm:$0xf]
          %v1834 = vld [vmem:[%s241 + $0x58] sm:$0xf]
          %v1835 = vld [vmem:[%s241 + $0x5c] sm:$0xf]
          %v1836 = vld [vmem:[%s241 + $0x60] sm:$0xf]
          %v1837 = vld [vmem:[%s241 + $0x64] sm:$0xf]
          %v1838 = vld [vmem:[%s241 + $0x68] sm:$0xf]
          %v1839 = vld [vmem:[%s241 + $0x6c] sm:$0xf]
          %v1840 = vld [vmem:[%s241 + $0x70] sm:$0xf]
          %v1841 = vld [vmem:[%s241 + $0x74] sm:$0xf]
          %v1842 = vld [vmem:[%s241 + $0x78] sm:$0xf]
          %v1843 = vld [vmem:[%s241 + $0x7c] sm:$0xf]
          %v1844 = vpack.c.bf16 %v1788, %v1788
          %v1845 = vpack.c.bf16 %v1789, %v1789
          %v1878 = vunpack.c.l.b16 %v1812
          %v1879 = vunpack.c.l.b16 %v1813
          %v1880 = vunpack.c.l.b16 %v1814
          %v1881 = vunpack.c.l.b16 %v1815
          %v1882 = vunpack.c.l.b16 %v1816
          %v1883 = vunpack.c.l.b16 %v1817
          %v1884 = vunpack.c.l.b16 %v1818
          %v1885 = vunpack.c.l.b16 %v1819
          %v1886 = vunpack.c.l.b16 %v1820
          %v1887 = vunpack.c.l.b16 %v1821
          %v1888 = vunpack.c.l.b16 %v1822
          %v1889 = vunpack.c.l.b16 %v1823
          %v1890 = vunpack.c.l.b16 %v1824
          %v1891 = vunpack.c.l.b16 %v1825
          %v1892 = vunpack.c.l.b16 %v1826
          %v1893 = vunpack.c.l.b16 %v1827
          %v1894 = vunpack.c.l.b16 %v1828
          %v1895 = vunpack.c.l.b16 %v1829
          %v1896 = vunpack.c.l.b16 %v1830
          %v1897 = vunpack.c.l.b16 %v1831
          %v1898 = vunpack.c.l.b16 %v1832
          %v1899 = vunpack.c.l.b16 %v1833
          %v1900 = vunpack.c.l.b16 %v1834
          %v1901 = vunpack.c.l.b16 %v1835
          %v1902 = vunpack.c.l.b16 %v1836
          %v1903 = vunpack.c.l.b16 %v1837
          %v1904 = vunpack.c.l.b16 %v1838
          %v1905 = vunpack.c.l.b16 %v1839
          %v1906 = vunpack.c.l.b16 %v1840
          %v1907 = vunpack.c.l.b16 %v1841
          %v1908 = vunpack.c.l.b16 %v1842
          %v1909 = vunpack.c.l.b16 %v1843
          %v1910 = vpack.c.b16 %v1879, %v1878
          %v1911 = vpack.c.b16 %v1881, %v1880
          %v1912 = vpack.c.b16 %v1883, %v1882
          %v1913 = vpack.c.b16 %v1885, %v1884
          %v1914 = vpack.c.b16 %v1887, %v1886
          %v1915 = vpack.c.b16 %v1889, %v1888
          %v1916 = vpack.c.b16 %v1891, %v1890
          %v1917 = vpack.c.b16 %v1893, %v1892
          %v1918 = vpack.c.b16 %v1895, %v1894
          %v1919 = vpack.c.b16 %v1897, %v1896
          %v1920 = vpack.c.b16 %v1899, %v1898
          %v1921 = vpack.c.b16 %v1901, %v1900
          %v1922 = vpack.c.b16 %v1903, %v1902
          %v1923 = vpack.c.b16 %v1905, %v1904
          %v1924 = vpack.c.b16 %v1907, %v1906
          %v1925 = vpack.c.b16 %v1909, %v1908
          %vm1926 = vcmask 15360
          %v1928 = vsel %vm1926, %v1910, 0
          %v1931 = vsel %vm1926, %v1911, 0
          %v1934 = vsel %vm1926, %v1912, 0
          %v1937 = vsel %vm1926, %v1913, 0
          %v1940 = vsel %vm1926, %v1914, 0
          %v1943 = vsel %vm1926, %v1915, 0
          %v1946 = vsel %vm1926, %v1916, 0
          %v1949 = vsel %vm1926, %v1917, 0
          %v1952 = vsel %vm1926, %v1918, 0
          %v1955 = vsel %vm1926, %v1919, 0
          %v1958 = vsel %vm1926, %v1920, 0
          %v1961 = vsel %vm1926, %v1921, 0
          %v1964 = vsel %vm1926, %v1922, 0
          %v1967 = vsel %vm1926, %v1923, 0
          %v1970 = vsel %vm1926, %v1924, 0
          %v1973 = vsel %vm1926, %v1925, 0
          %vm1975 = vcmask 1040384
          %v1977 = vsel %vm1975, %v1844, 0
          %v1980 = vsel %vm1975, %v1845, 0
          %1982 = vmatprep.subr.bf16.mxu0 0
          %1983 = vmatpush1.bf16.msra.mxu0 0
          %1984 = vmatprep.subr.bf16.mxu0 0
          %1985 = vmatpush1.bf16.msra.mxu0 0
          %1986 = vmatprep.subr.bf16.mxu0 0
          %1987 = vmatpush1.bf16.msra.mxu0 0
          %1988 = vmatprep.subr.bf16.mxu0 0
          %1989 = vmatpush1.bf16.msra.mxu0 0
          %1990 = vmatprep.subr.bf16.mxu0 0
          %1991 = vmatpush1.bf16.msra.mxu0 0
          %1992 = vmatprep.subr.bf16.mxu0 0
          %1993 = vmatpush1.bf16.msra.mxu0 0
          %1994 = vmatprep.subr.bf16.mxu0 0
          %1995 = vmatpush1.bf16.msra.mxu0 0
          %1996 = vmatprep.subr.bf16.mxu0 %v1980
          %1997 = vmatpush1.bf16.msra.mxu0 %v1977
          %1998 = vmatprep.subr.bf16.mxu0 0
          %1999 = vmatpush2.bf16.msra.mxu0 0
          %2000 = vmatprep.subr.bf16.mxu0 0
          %2001 = vmatpush2.bf16.msra.mxu0 0
          %2002 = vmatprep.subr.bf16.mxu0 0
          %2003 = vmatpush2.bf16.msra.mxu0 0
          %2004 = vmatprep.subr.bf16.mxu0 0
          %2005 = vmatpush2.bf16.msra.mxu0 0
          %2006 = vmatprep.subr.bf16.mxu0 0
          %2007 = vmatpush2.bf16.msra.mxu0 0
          %2008 = vmatprep.subr.bf16.mxu0 0
          %2009 = vmatpush2.bf16.msra.mxu0 0
          %2010 = vmatprep.subr.bf16.mxu0 0
          %2011 = vmatpush2.bf16.msra.mxu0 0
          %2012 = vmatprep.subr.bf16.mxu0 0
          %2013 = vmatpush2.bf16.msra.mxu0 0
          %2014 = vmatprep.mubr.bf16.mxu0 0
          %2015 = vmatmul.mubr.bf16.gmra.mxu0 %v1928
          %v2016 = vpop.f32.mrf.mxu0
          %v2017 = vadd.f32 0.0, %v2016
          %v2018 = vpop.f32.mrf.mxu0
          %v2019 = vadd.f32 0.0, %v2018
          %v2020 = vpop.f32.mrf.mxu0
          %v2021 = vadd.f32 0.0, %v2020
          %v2022 = vpop.f32.mrf.mxu0
          %v2023 = vadd.f32 0.0, %v2022
          %2024 = vmatprep.mubr.bf16.mxu0 0
          %2025 = vmatmul.mubr.bf16.gmra.mxu0 %v1931
          %v2026 = vpop.f32.mrf.mxu0
          %v2027 = vadd.f32 0.0, %v2026
          %v2028 = vpop.f32.mrf.mxu0
          %v2029 = vadd.f32 0.0, %v2028
          %v2030 = vpop.f32.mrf.mxu0
          %v2031 = vadd.f32 0.0, %v2030
          %v2032 = vpop.f32.mrf.mxu0
          %v2033 = vadd.f32 0.0, %v2032
          %2034 = vmatprep.mubr.bf16.mxu0 0
          %2035 = vmatmul.mubr.bf16.gmra.mxu0 %v1934
          %v2036 = vpop.f32.mrf.mxu0
          %v2037 = vadd.f32 0.0, %v2036
          %v2038 = vpop.f32.mrf.mxu0
          %v2039 = vadd.f32 0.0, %v2038
          %v2040 = vpop.f32.mrf.mxu0
          %v2041 = vadd.f32 0.0, %v2040
          %v2042 = vpop.f32.mrf.mxu0
          %v2043 = vadd.f32 0.0, %v2042
          %2044 = vmatprep.mubr.bf16.mxu0 0
          %2045 = vmatmul.mubr.bf16.gmra.mxu0 %v1937
          %v2046 = vpop.f32.mrf.mxu0
          %v2047 = vadd.f32 0.0, %v2046
          %v2048 = vpop.f32.mrf.mxu0
          %v2049 = vadd.f32 0.0, %v2048
          %v2050 = vpop.f32.mrf.mxu0
          %v2051 = vadd.f32 0.0, %v2050
          %v2052 = vpop.f32.mrf.mxu0
          %v2053 = vadd.f32 0.0, %v2052
          %2054 = vmatprep.mubr.bf16.mxu0 0
          %2055 = vmatmul.mubr.bf16.gmra.mxu0 %v1940
          %v2056 = vpop.f32.mrf.mxu0
          %v2057 = vadd.f32 0.0, %v2056
          %v2058 = vpop.f32.mrf.mxu0
          %v2059 = vadd.f32 0.0, %v2058
          %v2060 = vpop.f32.mrf.mxu0
          %v2061 = vadd.f32 0.0, %v2060
          %v2062 = vpop.f32.mrf.mxu0
          %v2063 = vadd.f32 0.0, %v2062
          %2064 = vmatprep.mubr.bf16.mxu0 0
          %2065 = vmatmul.mubr.bf16.gmra.mxu0 %v1943
          %v2066 = vpop.f32.mrf.mxu0
          %v2067 = vadd.f32 0.0, %v2066
          %v2068 = vpop.f32.mrf.mxu0
          %v2069 = vadd.f32 0.0, %v2068
          %v2070 = vpop.f32.mrf.mxu0
          %v2071 = vadd.f32 0.0, %v2070
          %v2072 = vpop.f32.mrf.mxu0
          %v2073 = vadd.f32 0.0, %v2072
          %2074 = vmatprep.mubr.bf16.mxu0 0
          %2075 = vmatmul.mubr.bf16.gmra.mxu0 %v1946
          %v2076 = vpop.f32.mrf.mxu0
          %v2077 = vadd.f32 0.0, %v2076
          %v2078 = vpop.f32.mrf.mxu0
          %v2079 = vadd.f32 0.0, %v2078
          %v2080 = vpop.f32.mrf.mxu0
          %v2081 = vadd.f32 0.0, %v2080
          %v2082 = vpop.f32.mrf.mxu0
          %v2083 = vadd.f32 0.0, %v2082
          %2084 = vmatprep.mubr.bf16.mxu0 0
          %2085 = vmatmul.mubr.bf16.gmra.mxu0 %v1949
          %v2086 = vpop.f32.mrf.mxu0
          %v2087 = vadd.f32 0.0, %v2086
          %v2088 = vpop.f32.mrf.mxu0
          %v2089 = vadd.f32 0.0, %v2088
          %v2090 = vpop.f32.mrf.mxu0
          %v2091 = vadd.f32 0.0, %v2090
          %v2092 = vpop.f32.mrf.mxu0
          %v2093 = vadd.f32 0.0, %v2092
          %2094 = vmatprep.mubr.bf16.mxu0 0
          %2095 = vmatmul.mubr.bf16.gmra.mxu0 %v1952
          %v2096 = vpop.f32.mrf.mxu0
          %v2097 = vadd.f32 0.0, %v2096
          %v2098 = vpop.f32.mrf.mxu0
          %v2099 = vadd.f32 0.0, %v2098
          %v2100 = vpop.f32.mrf.mxu0
          %v2101 = vadd.f32 0.0, %v2100
          %v2102 = vpop.f32.mrf.mxu0
          %v2103 = vadd.f32 0.0, %v2102
          %2104 = vmatprep.mubr.bf16.mxu0 0
          %2105 = vmatmul.mubr.bf16.gmra.mxu0 %v1955
          %v2106 = vpop.f32.mrf.mxu0
          %v2107 = vadd.f32 0.0, %v2106
          %v2108 = vpop.f32.mrf.mxu0
          %v2109 = vadd.f32 0.0, %v2108
          %v2110 = vpop.f32.mrf.mxu0
          %v2111 = vadd.f32 0.0, %v2110
          %v2112 = vpop.f32.mrf.mxu0
          %v2113 = vadd.f32 0.0, %v2112
          %2114 = vmatprep.mubr.bf16.mxu0 0
          %2115 = vmatmul.mubr.bf16.gmra.mxu0 %v1958
          %v2116 = vpop.f32.mrf.mxu0
          %v2117 = vadd.f32 0.0, %v2116
          %v2118 = vpop.f32.mrf.mxu0
          %v2119 = vadd.f32 0.0, %v2118
          %v2120 = vpop.f32.mrf.mxu0
          %v2121 = vadd.f32 0.0, %v2120
          %v2122 = vpop.f32.mrf.mxu0
          %v2123 = vadd.f32 0.0, %v2122
          %2124 = vmatprep.mubr.bf16.mxu0 0
          %2125 = vmatmul.mubr.bf16.gmra.mxu0 %v1961
          %v2126 = vpop.f32.mrf.mxu0
          %v2127 = vadd.f32 0.0, %v2126
          %v2128 = vpop.f32.mrf.mxu0
          %v2129 = vadd.f32 0.0, %v2128
          %v2130 = vpop.f32.mrf.mxu0
          %v2131 = vadd.f32 0.0, %v2130
          %v2132 = vpop.f32.mrf.mxu0
          %v2133 = vadd.f32 0.0, %v2132
          %2134 = vmatprep.mubr.bf16.mxu0 0
          %2135 = vmatmul.mubr.bf16.gmra.mxu0 %v1964
          %v2136 = vpop.f32.mrf.mxu0
          %v2137 = vadd.f32 0.0, %v2136
          %v2138 = vpop.f32.mrf.mxu0
          %v2139 = vadd.f32 0.0, %v2138
          %v2140 = vpop.f32.mrf.mxu0
          %v2141 = vadd.f32 0.0, %v2140
          %v2142 = vpop.f32.mrf.mxu0
          %v2143 = vadd.f32 0.0, %v2142
          %2144 = vmatprep.mubr.bf16.mxu0 0
          %2145 = vmatmul.mubr.bf16.gmra.mxu0 %v1967
          %v2146 = vpop.f32.mrf.mxu0
          %v2147 = vadd.f32 0.0, %v2146
          %v2148 = vpop.f32.mrf.mxu0
          %v2149 = vadd.f32 0.0, %v2148
          %v2150 = vpop.f32.mrf.mxu0
          %v2151 = vadd.f32 0.0, %v2150
          %v2152 = vpop.f32.mrf.mxu0
          %v2153 = vadd.f32 0.0, %v2152
          %2154 = vmatprep.mubr.bf16.mxu0 0
          %2155 = vmatmul.mubr.bf16.gmra.mxu0 %v1970
          %v2156 = vpop.f32.mrf.mxu0
          %v2157 = vadd.f32 0.0, %v2156
          %v2158 = vpop.f32.mrf.mxu0
          %v2159 = vadd.f32 0.0, %v2158
          %v2160 = vpop.f32.mrf.mxu0
          %v2161 = vadd.f32 0.0, %v2160
          %v2162 = vpop.f32.mrf.mxu0
          %v2163 = vadd.f32 0.0, %v2162
          %2164 = vmatprep.mubr.bf16.mxu0 0
          %2165 = vmatmul.mubr.bf16.gmra.mxu0 %v1973
          %v2166 = vpop.f32.mrf.mxu0
          %v2167 = vadd.f32 0.0, %v2166
          %v2168 = vpop.f32.mrf.mxu0
          %v2169 = vadd.f32 0.0, %v2168
          %v2170 = vpop.f32.mrf.mxu0
          %v2171 = vadd.f32 0.0, %v2170
          %v2172 = vpop.f32.mrf.mxu0
          %v2173 = vadd.f32 0.0, %v2172
          %2174 = vdwg.mxu0
          %v2175 = vld [vmem:[%s2] sm:$0xff]
          %v2176 = vld [vmem:[%s2 + $0x8] sm:$0xff]
          %v2177 = vld [vmem:[%s2 + $0x10] sm:$0xff]
          %v2178 = vld [vmem:[%s2 + $0x18] sm:$0xff]
          %v2179 = vld [vmem:[%s2 + $0x20] sm:$0xff]
          %v2180 = vld [vmem:[%s2 + $0x28] sm:$0xff]
          %v2181 = vld [vmem:[%s2 + $0x30] sm:$0xff]
          %v2182 = vld [vmem:[%s2 + $0x38] sm:$0xff]
          %v2183 = vld [vmem:[%s2 + $0x40] sm:$0xff]
          %v2184 = vld [vmem:[%s2 + $0x48] sm:$0xff]
          %v2185 = vld [vmem:[%s2 + $0x50] sm:$0xff]
          %v2186 = vld [vmem:[%s2 + $0x58] sm:$0xff]
          %v2187 = vld [vmem:[%s2 + $0x60] sm:$0xff]
          %v2188 = vld [vmem:[%s2 + $0x68] sm:$0xff]
          %v2189 = vld [vmem:[%s2 + $0x70] sm:$0xff]
          %v2190 = vld [vmem:[%s2 + $0x78] sm:$0xff]
          %v2191 = vld [vmem:[%s2 + $0x80] sm:$0xff]
          %v2192 = vld [vmem:[%s2 + $0x88] sm:$0xff]
          %v2193 = vld [vmem:[%s2 + $0x90] sm:$0xff]
          %v2194 = vld [vmem:[%s2 + $0x98] sm:$0xff]
          %v2195 = vld [vmem:[%s2 + $0xa0] sm:$0xff]
          %v2196 = vld [vmem:[%s2 + $0xa8] sm:$0xff]
          %v2197 = vld [vmem:[%s2 + $0xb0] sm:$0xff]
          %v2198 = vld [vmem:[%s2 + $0xb8] sm:$0xff]
          %v2199 = vld [vmem:[%s2 + $0xc0] sm:$0xff]
          %v2200 = vld [vmem:[%s2 + $0xc8] sm:$0xff]
          %v2201 = vld [vmem:[%s2 + $0xd0] sm:$0xff]
          %v2202 = vld [vmem:[%s2 + $0xd8] sm:$0xff]
          %v2203 = vld [vmem:[%s2 + $0xe0] sm:$0xff]
          %v2204 = vld [vmem:[%s2 + $0xe8] sm:$0xff]
          %v2205 = vld [vmem:[%s2 + $0xf0] sm:$0xff]
          %v2206 = vld [vmem:[%s2 + $0xf8] sm:$0xff]
          %v2207 = vunpack.c.l.bf16 %v2175
          %v2208 = vunpack.c.h.bf16 %v2175
          %v2209 = vunpack.c.l.bf16 %v2176
          %v2210 = vunpack.c.h.bf16 %v2176
          %v2211 = vunpack.c.l.bf16 %v2177
          %v2212 = vunpack.c.h.bf16 %v2177
          %v2213 = vunpack.c.l.bf16 %v2178
          %v2214 = vunpack.c.h.bf16 %v2178
          %v2215 = vunpack.c.l.bf16 %v2179
          %v2216 = vunpack.c.h.bf16 %v2179
          %v2217 = vunpack.c.l.bf16 %v2180
          %v2218 = vunpack.c.h.bf16 %v2180
          %v2219 = vunpack.c.l.bf16 %v2181
          %v2220 = vunpack.c.h.bf16 %v2181
          %v2221 = vunpack.c.l.bf16 %v2182
          %v2222 = vunpack.c.h.bf16 %v2182
          %v2223 = vunpack.c.l.bf16 %v2183
          %v2224 = vunpack.c.h.bf16 %v2183
          %v2225 = vunpack.c.l.bf16 %v2184
          %v2226 = vunpack.c.h.bf16 %v2184
          %v2227 = vunpack.c.l.bf16 %v2185
          %v2228 = vunpack.c.h.bf16 %v2185
          %v2229 = vunpack.c.l.bf16 %v2186
          %v2230 = vunpack.c.h.bf16 %v2186
          %v2231 = vunpack.c.l.bf16 %v2187
          %v2232 = vunpack.c.h.bf16 %v2187
          %v2233 = vunpack.c.l.bf16 %v2188
          %v2234 = vunpack.c.h.bf16 %v2188
          %v2235 = vunpack.c.l.bf16 %v2189
          %v2236 = vunpack.c.h.bf16 %v2189
          %v2237 = vunpack.c.l.bf16 %v2190
          %v2238 = vunpack.c.h.bf16 %v2190
          %v2239 = vunpack.c.l.bf16 %v2191
          %v2240 = vunpack.c.h.bf16 %v2191
          %v2241 = vunpack.c.l.bf16 %v2192
          %v2242 = vunpack.c.h.bf16 %v2192
          %v2243 = vunpack.c.l.bf16 %v2193
          %v2244 = vunpack.c.h.bf16 %v2193
          %v2245 = vunpack.c.l.bf16 %v2194
          %v2246 = vunpack.c.h.bf16 %v2194
          %v2247 = vunpack.c.l.bf16 %v2195
          %v2248 = vunpack.c.h.bf16 %v2195
          %v2249 = vunpack.c.l.bf16 %v2196
          %v2250 = vunpack.c.h.bf16 %v2196
          %v2251 = vunpack.c.l.bf16 %v2197
          %v2252 = vunpack.c.h.bf16 %v2197
          %v2253 = vunpack.c.l.bf16 %v2198
          %v2254 = vunpack.c.h.bf16 %v2198
          %v2255 = vunpack.c.l.bf16 %v2199
          %v2256 = vunpack.c.h.bf16 %v2199
          %v2257 = vunpack.c.l.bf16 %v2200
          %v2258 = vunpack.c.h.bf16 %v2200
          %v2259 = vunpack.c.l.bf16 %v2201
          %v2260 = vunpack.c.h.bf16 %v2201
          %v2261 = vunpack.c.l.bf16 %v2202
          %v2262 = vunpack.c.h.bf16 %v2202
          %v2263 = vunpack.c.l.bf16 %v2203
          %v2264 = vunpack.c.h.bf16 %v2203
          %v2265 = vunpack.c.l.bf16 %v2204
          %v2266 = vunpack.c.h.bf16 %v2204
          %v2267 = vunpack.c.l.bf16 %v2205
          %v2268 = vunpack.c.h.bf16 %v2205
          %v2269 = vunpack.c.l.bf16 %v2206
          %v2270 = vunpack.c.h.bf16 %v2206
          %v2271 = vmul.f32 %v2207, %v2017
          %v2272 = vmul.f32 %v2208, %v2019
          %v2273 = vmul.f32 %v2209, %v2021
          %v2274 = vmul.f32 %v2210, %v2023
          %v2275 = vmul.f32 %v2211, %v2027
          %v2276 = vmul.f32 %v2212, %v2029
          %v2277 = vmul.f32 %v2213, %v2031
          %v2278 = vmul.f32 %v2214, %v2033
          %v2279 = vmul.f32 %v2215, %v2037
          %v2280 = vmul.f32 %v2216, %v2039
          %v2281 = vmul.f32 %v2217, %v2041
          %v2282 = vmul.f32 %v2218, %v2043
          %v2283 = vmul.f32 %v2219, %v2047
          %v2284 = vmul.f32 %v2220, %v2049
          %v2285 = vmul.f32 %v2221, %v2051
          %v2286 = vmul.f32 %v2222, %v2053
          %v2287 = vmul.f32 %v2223, %v2057
          %v2288 = vmul.f32 %v2224, %v2059
          %v2289 = vmul.f32 %v2225, %v2061
          %v2290 = vmul.f32 %v2226, %v2063
          %v2291 = vmul.f32 %v2227, %v2067
          %v2292 = vmul.f32 %v2228, %v2069
          %v2293 = vmul.f32 %v2229, %v2071
          %v2294 = vmul.f32 %v2230, %v2073
          %v2295 = vmul.f32 %v2231, %v2077
          %v2296 = vmul.f32 %v2232, %v2079
          %v2297 = vmul.f32 %v2233, %v2081
          %v2298 = vmul.f32 %v2234, %v2083
          %v2299 = vmul.f32 %v2235, %v2087
          %v2300 = vmul.f32 %v2236, %v2089
          %v2301 = vmul.f32 %v2237, %v2091
          %v2302 = vmul.f32 %v2238, %v2093
          %v2303 = vmul.f32 %v2239, %v2097
          %v2304 = vmul.f32 %v2240, %v2099
          %v2305 = vmul.f32 %v2241, %v2101
          %v2306 = vmul.f32 %v2242, %v2103
          %v2307 = vmul.f32 %v2243, %v2107
          %v2308 = vmul.f32 %v2244, %v2109
          %v2309 = vmul.f32 %v2245, %v2111
          %v2310 = vmul.f32 %v2246, %v2113
          %v2311 = vmul.f32 %v2247, %v2117
          %v2312 = vmul.f32 %v2248, %v2119
          %v2313 = vmul.f32 %v2249, %v2121
          %v2314 = vmul.f32 %v2250, %v2123
          %v2315 = vmul.f32 %v2251, %v2127
          %v2316 = vmul.f32 %v2252, %v2129
          %v2317 = vmul.f32 %v2253, %v2131
          %v2318 = vmul.f32 %v2254, %v2133
          %v2319 = vmul.f32 %v2255, %v2137
          %v2320 = vmul.f32 %v2256, %v2139
          %v2321 = vmul.f32 %v2257, %v2141
          %v2322 = vmul.f32 %v2258, %v2143
          %v2323 = vmul.f32 %v2259, %v2147
          %v2324 = vmul.f32 %v2260, %v2149
          %v2325 = vmul.f32 %v2261, %v2151
          %v2326 = vmul.f32 %v2262, %v2153
          %v2327 = vmul.f32 %v2263, %v2157
          %v2328 = vmul.f32 %v2264, %v2159
          %v2329 = vmul.f32 %v2265, %v2161
          %v2330 = vmul.f32 %v2266, %v2163
          %v2331 = vmul.f32 %v2267, %v2167
          %v2332 = vmul.f32 %v2268, %v2169
          %v2333 = vmul.f32 %v2269, %v2171
          %v2334 = vmul.f32 %v2270, %v2173
          %v2335 = vrot.slane %v2271, 4
          %v2336 = vadd.f32 %v2271, %v2335
          %v2337 = vrot.slane %v2336, 2
          %v2338 = vadd.f32 %v2336, %v2337
          %v2339 = vrot.slane %v2338, 1
          %v2340 = vadd.f32 %v2338, %v2339
          %v2341 = vsel %vm1618, %v2272, 0.0
          %v2342 = vrot.slane %v2341, 4
          %v2343 = vadd.f32 %v2341, %v2342
          %v2344 = vrot.slane %v2343, 2
          %v2345 = vadd.f32 %v2343, %v2344
          %v2346 = vrot.slane %v2345, 1
          %v2347 = vadd.f32 %v2345, %v2346
          %v2348 = vrot.slane %v2273, 4
          %v2349 = vadd.f32 %v2273, %v2348
          %v2350 = vrot.slane %v2349, 2
          %v2351 = vadd.f32 %v2349, %v2350
          %v2352 = vrot.slane %v2351, 1
          %v2353 = vadd.f32 %v2351, %v2352
          %v2354 = vsel %vm1618, %v2274, 0.0
          %v2355 = vrot.slane %v2354, 4
          %v2356 = vadd.f32 %v2354, %v2355
          %v2357 = vrot.slane %v2356, 2
          %v2358 = vadd.f32 %v2356, %v2357
          %v2359 = vrot.slane %v2358, 1
          %v2360 = vadd.f32 %v2358, %v2359
          %v2361 = vrot.slane %v2275, 4
          %v2362 = vadd.f32 %v2275, %v2361
          %v2363 = vrot.slane %v2362, 2
          %v2364 = vadd.f32 %v2362, %v2363
          %v2365 = vrot.slane %v2364, 1
          %v2366 = vadd.f32 %v2364, %v2365
          %v2367 = vsel %vm1618, %v2276, 0.0
          %v2368 = vrot.slane %v2367, 4
          %v2369 = vadd.f32 %v2367, %v2368
          %v2370 = vrot.slane %v2369, 2
          %v2371 = vadd.f32 %v2369, %v2370
          %v2372 = vrot.slane %v2371, 1
          %v2373 = vadd.f32 %v2371, %v2372
          %v2374 = vrot.slane %v2277, 4
          %v2375 = vadd.f32 %v2277, %v2374
          %v2376 = vrot.slane %v2375, 2
          %v2377 = vadd.f32 %v2375, %v2376
          %v2378 = vrot.slane %v2377, 1
          %v2379 = vadd.f32 %v2377, %v2378
          %v2380 = vsel %vm1618, %v2278, 0.0
          %v2381 = vrot.slane %v2380, 4
          %v2382 = vadd.f32 %v2380, %v2381
          %v2383 = vrot.slane %v2382, 2
          %v2384 = vadd.f32 %v2382, %v2383
          %v2385 = vrot.slane %v2384, 1
          %v2386 = vadd.f32 %v2384, %v2385
          %v2387 = vrot.slane %v2279, 4
          %v2388 = vadd.f32 %v2279, %v2387
          %v2389 = vrot.slane %v2388, 2
          %v2390 = vadd.f32 %v2388, %v2389
          %v2391 = vrot.slane %v2390, 1
          %v2392 = vadd.f32 %v2390, %v2391
          %v2393 = vsel %vm1618, %v2280, 0.0
          %v2394 = vrot.slane %v2393, 4
          %v2395 = vadd.f32 %v2393, %v2394
          %v2396 = vrot.slane %v2395, 2
          %v2397 = vadd.f32 %v2395, %v2396
          %v2398 = vrot.slane %v2397, 1
          %v2399 = vadd.f32 %v2397, %v2398
          %v2400 = vrot.slane %v2281, 4
          %v2401 = vadd.f32 %v2281, %v2400
          %v2402 = vrot.slane %v2401, 2
          %v2403 = vadd.f32 %v2401, %v2402
          %v2404 = vrot.slane %v2403, 1
          %v2405 = vadd.f32 %v2403, %v2404
          %v2406 = vsel %vm1618, %v2282, 0.0
          %v2407 = vrot.slane %v2406, 4
          %v2408 = vadd.f32 %v2406, %v2407
          %v2409 = vrot.slane %v2408, 2
          %v2410 = vadd.f32 %v2408, %v2409
          %v2411 = vrot.slane %v2410, 1
          %v2412 = vadd.f32 %v2410, %v2411
          %v2413 = vrot.slane %v2283, 4
          %v2414 = vadd.f32 %v2283, %v2413
          %v2415 = vrot.slane %v2414, 2
          %v2416 = vadd.f32 %v2414, %v2415
          %v2417 = vrot.slane %v2416, 1
          %v2418 = vadd.f32 %v2416, %v2417
          %v2419 = vsel %vm1618, %v2284, 0.0
          %v2420 = vrot.slane %v2419, 4
          %v2421 = vadd.f32 %v2419, %v2420
          %v2422 = vrot.slane %v2421, 2
          %v2423 = vadd.f32 %v2421, %v2422
          %v2424 = vrot.slane %v2423, 1
          %v2425 = vadd.f32 %v2423, %v2424
          %v2426 = vrot.slane %v2285, 4
          %v2427 = vadd.f32 %v2285, %v2426
          %v2428 = vrot.slane %v2427, 2
          %v2429 = vadd.f32 %v2427, %v2428
          %v2430 = vrot.slane %v2429, 1
          %v2431 = vadd.f32 %v2429, %v2430
          %v2432 = vsel %vm1618, %v2286, 0.0
          %v2433 = vrot.slane %v2432, 4
          %v2434 = vadd.f32 %v2432, %v2433
          %v2435 = vrot.slane %v2434, 2
          %v2436 = vadd.f32 %v2434, %v2435
          %v2437 = vrot.slane %v2436, 1
          %v2438 = vadd.f32 %v2436, %v2437
          %v2439 = vrot.slane %v2287, 4
          %v2440 = vadd.f32 %v2287, %v2439
          %v2441 = vrot.slane %v2440, 2
          %v2442 = vadd.f32 %v2440, %v2441
          %v2443 = vrot.slane %v2442, 1
          %v2444 = vadd.f32 %v2442, %v2443
          %v2445 = vsel %vm1618, %v2288, 0.0
          %v2446 = vrot.slane %v2445, 4
          %v2447 = vadd.f32 %v2445, %v2446
          %v2448 = vrot.slane %v2447, 2
          %v2449 = vadd.f32 %v2447, %v2448
          %v2450 = vrot.slane %v2449, 1
          %v2451 = vadd.f32 %v2449, %v2450
          %v2452 = vrot.slane %v2289, 4
          %v2453 = vadd.f32 %v2289, %v2452
          %v2454 = vrot.slane %v2453, 2
          %v2455 = vadd.f32 %v2453, %v2454
          %v2456 = vrot.slane %v2455, 1
          %v2457 = vadd.f32 %v2455, %v2456
          %v2458 = vsel %vm1618, %v2290, 0.0
          %v2459 = vrot.slane %v2458, 4
          %v2460 = vadd.f32 %v2458, %v2459
          %v2461 = vrot.slane %v2460, 2
          %v2462 = vadd.f32 %v2460, %v2461
          %v2463 = vrot.slane %v2462, 1
          %v2464 = vadd.f32 %v2462, %v2463
          %v2465 = vrot.slane %v2291, 4
          %v2466 = vadd.f32 %v2291, %v2465
          %v2467 = vrot.slane %v2466, 2
          %v2468 = vadd.f32 %v2466, %v2467
          %v2469 = vrot.slane %v2468, 1
          %v2470 = vadd.f32 %v2468, %v2469
          %v2471 = vsel %vm1618, %v2292, 0.0
          %v2472 = vrot.slane %v2471, 4
          %v2473 = vadd.f32 %v2471, %v2472
          %v2474 = vrot.slane %v2473, 2
          %v2475 = vadd.f32 %v2473, %v2474
          %v2476 = vrot.slane %v2475, 1
          %v2477 = vadd.f32 %v2475, %v2476
          %v2478 = vrot.slane %v2293, 4
          %v2479 = vadd.f32 %v2293, %v2478
          %v2480 = vrot.slane %v2479, 2
          %v2481 = vadd.f32 %v2479, %v2480
          %v2482 = vrot.slane %v2481, 1
          %v2483 = vadd.f32 %v2481, %v2482
          %v2484 = vsel %vm1618, %v2294, 0.0
          %v2485 = vrot.slane %v2484, 4
          %v2486 = vadd.f32 %v2484, %v2485
          %v2487 = vrot.slane %v2486, 2
          %v2488 = vadd.f32 %v2486, %v2487
          %v2489 = vrot.slane %v2488, 1
          %v2490 = vadd.f32 %v2488, %v2489
          %v2491 = vrot.slane %v2295, 4
          %v2492 = vadd.f32 %v2295, %v2491
          %v2493 = vrot.slane %v2492, 2
          %v2494 = vadd.f32 %v2492, %v2493
          %v2495 = vrot.slane %v2494, 1
          %v2496 = vadd.f32 %v2494, %v2495
          %v2497 = vsel %vm1618, %v2296, 0.0
          %v2498 = vrot.slane %v2497, 4
          %v2499 = vadd.f32 %v2497, %v2498
          %v2500 = vrot.slane %v2499, 2
          %v2501 = vadd.f32 %v2499, %v2500
          %v2502 = vrot.slane %v2501, 1
          %v2503 = vadd.f32 %v2501, %v2502
          %v2504 = vrot.slane %v2297, 4
          %v2505 = vadd.f32 %v2297, %v2504
          %v2506 = vrot.slane %v2505, 2
          %v2507 = vadd.f32 %v2505, %v2506
          %v2508 = vrot.slane %v2507, 1
          %v2509 = vadd.f32 %v2507, %v2508
          %v2510 = vsel %vm1618, %v2298, 0.0
          %v2511 = vrot.slane %v2510, 4
          %v2512 = vadd.f32 %v2510, %v2511
          %v2513 = vrot.slane %v2512, 2
          %v2514 = vadd.f32 %v2512, %v2513
          %v2515 = vrot.slane %v2514, 1
          %v2516 = vadd.f32 %v2514, %v2515
          %v2517 = vrot.slane %v2299, 4
          %v2518 = vadd.f32 %v2299, %v2517
          %v2519 = vrot.slane %v2518, 2
          %v2520 = vadd.f32 %v2518, %v2519
          %v2521 = vrot.slane %v2520, 1
          %v2522 = vadd.f32 %v2520, %v2521
          %v2523 = vsel %vm1618, %v2300, 0.0
          %v2524 = vrot.slane %v2523, 4
          %v2525 = vadd.f32 %v2523, %v2524
          %v2526 = vrot.slane %v2525, 2
          %v2527 = vadd.f32 %v2525, %v2526
          %v2528 = vrot.slane %v2527, 1
          %v2529 = vadd.f32 %v2527, %v2528
          %v2530 = vrot.slane %v2301, 4
          %v2531 = vadd.f32 %v2301, %v2530
          %v2532 = vrot.slane %v2531, 2
          %v2533 = vadd.f32 %v2531, %v2532
          %v2534 = vrot.slane %v2533, 1
          %v2535 = vadd.f32 %v2533, %v2534
          %v2536 = vsel %vm1618, %v2302, 0.0
          %v2537 = vrot.slane %v2536, 4
          %v2538 = vadd.f32 %v2536, %v2537
          %v2539 = vrot.slane %v2538, 2
          %v2540 = vadd.f32 %v2538, %v2539
          %v2541 = vrot.slane %v2540, 1
          %v2542 = vadd.f32 %v2540, %v2541
          %v2543 = vrot.slane %v2303, 4
          %v2544 = vadd.f32 %v2303, %v2543
          %v2545 = vrot.slane %v2544, 2
          %v2546 = vadd.f32 %v2544, %v2545
          %v2547 = vrot.slane %v2546, 1
          %v2548 = vadd.f32 %v2546, %v2547
          %v2549 = vsel %vm1618, %v2304, 0.0
          %v2550 = vrot.slane %v2549, 4
          %v2551 = vadd.f32 %v2549, %v2550
          %v2552 = vrot.slane %v2551, 2
          %v2553 = vadd.f32 %v2551, %v2552
          %v2554 = vrot.slane %v2553, 1
          %v2555 = vadd.f32 %v2553, %v2554
          %v2556 = vrot.slane %v2305, 4
          %v2557 = vadd.f32 %v2305, %v2556
          %v2558 = vrot.slane %v2557, 2
          %v2559 = vadd.f32 %v2557, %v2558
          %v2560 = vrot.slane %v2559, 1
          %v2561 = vadd.f32 %v2559, %v2560
          %v2562 = vsel %vm1618, %v2306, 0.0
          %v2563 = vrot.slane %v2562, 4
          %v2564 = vadd.f32 %v2562, %v2563
          %v2565 = vrot.slane %v2564, 2
          %v2566 = vadd.f32 %v2564, %v2565
          %v2567 = vrot.slane %v2566, 1
          %v2568 = vadd.f32 %v2566, %v2567
          %v2569 = vrot.slane %v2307, 4
          %v2570 = vadd.f32 %v2307, %v2569
          %v2571 = vrot.slane %v2570, 2
          %v2572 = vadd.f32 %v2570, %v2571
          %v2573 = vrot.slane %v2572, 1
          %v2574 = vadd.f32 %v2572, %v2573
          %v2575 = vsel %vm1618, %v2308, 0.0
          %v2576 = vrot.slane %v2575, 4
          %v2577 = vadd.f32 %v2575, %v2576
          %v2578 = vrot.slane %v2577, 2
          %v2579 = vadd.f32 %v2577, %v2578
          %v2580 = vrot.slane %v2579, 1
          %v2581 = vadd.f32 %v2579, %v2580
          %v2582 = vrot.slane %v2309, 4
          %v2583 = vadd.f32 %v2309, %v2582
          %v2584 = vrot.slane %v2583, 2
          %v2585 = vadd.f32 %v2583, %v2584
          %v2586 = vrot.slane %v2585, 1
          %v2587 = vadd.f32 %v2585, %v2586
          %v2588 = vsel %vm1618, %v2310, 0.0
          %v2589 = vrot.slane %v2588, 4
          %v2590 = vadd.f32 %v2588, %v2589
          %v2591 = vrot.slane %v2590, 2
          %v2592 = vadd.f32 %v2590, %v2591
          %v2593 = vrot.slane %v2592, 1
          %v2594 = vadd.f32 %v2592, %v2593
          %v2595 = vrot.slane %v2311, 4
          %v2596 = vadd.f32 %v2311, %v2595
          %v2597 = vrot.slane %v2596, 2
          %v2598 = vadd.f32 %v2596, %v2597
          %v2599 = vrot.slane %v2598, 1
          %v2600 = vadd.f32 %v2598, %v2599
          %v2601 = vsel %vm1618, %v2312, 0.0
          %v2602 = vrot.slane %v2601, 4
          %v2603 = vadd.f32 %v2601, %v2602
          %v2604 = vrot.slane %v2603, 2
          %v2605 = vadd.f32 %v2603, %v2604
          %v2606 = vrot.slane %v2605, 1
          %v2607 = vadd.f32 %v2605, %v2606
          %v2608 = vrot.slane %v2313, 4
          %v2609 = vadd.f32 %v2313, %v2608
          %v2610 = vrot.slane %v2609, 2
          %v2611 = vadd.f32 %v2609, %v2610
          %v2612 = vrot.slane %v2611, 1
          %v2613 = vadd.f32 %v2611, %v2612
          %v2614 = vsel %vm1618, %v2314, 0.0
          %v2615 = vrot.slane %v2614, 4
          %v2616 = vadd.f32 %v2614, %v2615
          %v2617 = vrot.slane %v2616, 2
          %v2618 = vadd.f32 %v2616, %v2617
          %v2619 = vrot.slane %v2618, 1
          %v2620 = vadd.f32 %v2618, %v2619
          %v2621 = vrot.slane %v2315, 4
          %v2622 = vadd.f32 %v2315, %v2621
          %v2623 = vrot.slane %v2622, 2
          %v2624 = vadd.f32 %v2622, %v2623
          %v2625 = vrot.slane %v2624, 1
          %v2626 = vadd.f32 %v2624, %v2625
          %v2627 = vsel %vm1618, %v2316, 0.0
          %v2628 = vrot.slane %v2627, 4
          %v2629 = vadd.f32 %v2627, %v2628
          %v2630 = vrot.slane %v2629, 2
          %v2631 = vadd.f32 %v2629, %v2630
          %v2632 = vrot.slane %v2631, 1
          %v2633 = vadd.f32 %v2631, %v2632
          %v2634 = vrot.slane %v2317, 4
          %v2635 = vadd.f32 %v2317, %v2634
          %v2636 = vrot.slane %v2635, 2
          %v2637 = vadd.f32 %v2635, %v2636
          %v2638 = vrot.slane %v2637, 1
          %v2639 = vadd.f32 %v2637, %v2638
          %v2640 = vsel %vm1618, %v2318, 0.0
          %v2641 = vrot.slane %v2640, 4
          %v2642 = vadd.f32 %v2640, %v2641
          %v2643 = vrot.slane %v2642, 2
          %v2644 = vadd.f32 %v2642, %v2643
          %v2645 = vrot.slane %v2644, 1
          %v2646 = vadd.f32 %v2644, %v2645
          %v2647 = vrot.slane %v2319, 4
          %v2648 = vadd.f32 %v2319, %v2647
          %v2649 = vrot.slane %v2648, 2
          %v2650 = vadd.f32 %v2648, %v2649
          %v2651 = vrot.slane %v2650, 1
          %v2652 = vadd.f32 %v2650, %v2651
          %v2653 = vsel %vm1618, %v2320, 0.0
          %v2654 = vrot.slane %v2653, 4
          %v2655 = vadd.f32 %v2653, %v2654
          %v2656 = vrot.slane %v2655, 2
          %v2657 = vadd.f32 %v2655, %v2656
          %v2658 = vrot.slane %v2657, 1
          %v2659 = vadd.f32 %v2657, %v2658
          %v2660 = vrot.slane %v2321, 4
          %v2661 = vadd.f32 %v2321, %v2660
          %v2662 = vrot.slane %v2661, 2
          %v2663 = vadd.f32 %v2661, %v2662
          %v2664 = vrot.slane %v2663, 1
          %v2665 = vadd.f32 %v2663, %v2664
          %v2666 = vsel %vm1618, %v2322, 0.0
          %v2667 = vrot.slane %v2666, 4
          %v2668 = vadd.f32 %v2666, %v2667
          %v2669 = vrot.slane %v2668, 2
          %v2670 = vadd.f32 %v2668, %v2669
          %v2671 = vrot.slane %v2670, 1
          %v2672 = vadd.f32 %v2670, %v2671
          %v2673 = vrot.slane %v2323, 4
          %v2674 = vadd.f32 %v2323, %v2673
          %v2675 = vrot.slane %v2674, 2
          %v2676 = vadd.f32 %v2674, %v2675
          %v2677 = vrot.slane %v2676, 1
          %v2678 = vadd.f32 %v2676, %v2677
          %v2679 = vsel %vm1618, %v2324, 0.0
          %v2680 = vrot.slane %v2679, 4
          %v2681 = vadd.f32 %v2679, %v2680
          %v2682 = vrot.slane %v2681, 2
          %v2683 = vadd.f32 %v2681, %v2682
          %v2684 = vrot.slane %v2683, 1
          %v2685 = vadd.f32 %v2683, %v2684
          %v2686 = vrot.slane %v2325, 4
          %v2687 = vadd.f32 %v2325, %v2686
          %v2688 = vrot.slane %v2687, 2
          %v2689 = vadd.f32 %v2687, %v2688
          %v2690 = vrot.slane %v2689, 1
          %v2691 = vadd.f32 %v2689, %v2690
          %v2692 = vsel %vm1618, %v2326, 0.0
          %v2693 = vrot.slane %v2692, 4
          %v2694 = vadd.f32 %v2692, %v2693
          %v2695 = vrot.slane %v2694, 2
          %v2696 = vadd.f32 %v2694, %v2695
          %v2697 = vrot.slane %v2696, 1
          %v2698 = vadd.f32 %v2696, %v2697
          %v2699 = vrot.slane %v2327, 4
          %v2700 = vadd.f32 %v2327, %v2699
          %v2701 = vrot.slane %v2700, 2
          %v2702 = vadd.f32 %v2700, %v2701
          %v2703 = vrot.slane %v2702, 1
          %v2704 = vadd.f32 %v2702, %v2703
          %v2705 = vsel %vm1618, %v2328, 0.0
          %v2706 = vrot.slane %v2705, 4
          %v2707 = vadd.f32 %v2705, %v2706
          %v2708 = vrot.slane %v2707, 2
          %v2709 = vadd.f32 %v2707, %v2708
          %v2710 = vrot.slane %v2709, 1
          %v2711 = vadd.f32 %v2709, %v2710
          %v2712 = vrot.slane %v2329, 4
          %v2713 = vadd.f32 %v2329, %v2712
          %v2714 = vrot.slane %v2713, 2
          %v2715 = vadd.f32 %v2713, %v2714
          %v2716 = vrot.slane %v2715, 1
          %v2717 = vadd.f32 %v2715, %v2716
          %v2718 = vsel %vm1618, %v2330, 0.0
          %v2719 = vrot.slane %v2718, 4
          %v2720 = vadd.f32 %v2718, %v2719
          %v2721 = vrot.slane %v2720, 2
          %v2722 = vadd.f32 %v2720, %v2721
          %v2723 = vrot.slane %v2722, 1
          %v2724 = vadd.f32 %v2722, %v2723
          %v2725 = vrot.slane %v2331, 4
          %v2726 = vadd.f32 %v2331, %v2725
          %v2727 = vrot.slane %v2726, 2
          %v2728 = vadd.f32 %v2726, %v2727
          %v2729 = vrot.slane %v2728, 1
          %v2730 = vadd.f32 %v2728, %v2729
          %v2731 = vsel %vm1618, %v2332, 0.0
          %v2732 = vrot.slane %v2731, 4
          %v2733 = vadd.f32 %v2731, %v2732
          %v2734 = vrot.slane %v2733, 2
          %v2735 = vadd.f32 %v2733, %v2734
          %v2736 = vrot.slane %v2735, 1
          %v2737 = vadd.f32 %v2735, %v2736
          %v2738 = vrot.slane %v2333, 4
          %v2739 = vadd.f32 %v2333, %v2738
          %v2740 = vrot.slane %v2739, 2
          %v2741 = vadd.f32 %v2739, %v2740
          %v2742 = vrot.slane %v2741, 1
          %v2743 = vadd.f32 %v2741, %v2742
          %v2744 = vsel %vm1618, %v2334, 0.0
          %v2745 = vrot.slane %v2744, 4
          %v2746 = vadd.f32 %v2744, %v2745
          %v2747 = vrot.slane %v2746, 2
          %v2748 = vadd.f32 %v2746, %v2747
          %v2749 = vrot.slane %v2748, 1
          %v2750 = vadd.f32 %v2748, %v2749
          %vm2815 = vcmask 1041409
          %v2816 = vsel %vm2815, %v2353, %v2340
          %vm2817 = vcmask 1042434
          %v2818 = vsel %vm2817, %v2366, %v2816
          %vm2819 = vcmask 1043459
          %v2820 = vsel %vm2819, %v2379, %v2818
          %vm2821 = vcmask 1044484
          %v2822 = vsel %vm2821, %v2392, %v2820
          %vm2823 = vcmask 1045509
          %v2824 = vsel %vm2823, %v2405, %v2822
          %vm2825 = vcmask 1046534
          %v2826 = vsel %vm2825, %v2418, %v2824
          %vm2827 = vcmask 1047559
          %v2828 = vsel %vm2827, %v2431, %v2826
          %v2829 = vsel %vm2815, %v2360, %v2347
          %v2830 = vsel %vm2817, %v2373, %v2829
          %v2831 = vsel %vm2819, %v2386, %v2830
          %v2832 = vsel %vm2821, %v2399, %v2831
          %v2833 = vsel %vm2823, %v2412, %v2832
          %v2834 = vsel %vm2825, %v2425, %v2833
          %v2835 = vsel %vm2827, %v2438, %v2834
          %v2836 = vsel %vm2815, %v2457, %v2444
          %v2837 = vsel %vm2817, %v2470, %v2836
          %v2838 = vsel %vm2819, %v2483, %v2837
          %v2839 = vsel %vm2821, %v2496, %v2838
          %v2840 = vsel %vm2823, %v2509, %v2839
          %v2841 = vsel %vm2825, %v2522, %v2840
          %v2842 = vsel %vm2827, %v2535, %v2841
          %v2843 = vsel %vm2815, %v2464, %v2451
          %v2844 = vsel %vm2817, %v2477, %v2843
          %v2845 = vsel %vm2819, %v2490, %v2844
          %v2846 = vsel %vm2821, %v2503, %v2845
          %v2847 = vsel %vm2823, %v2516, %v2846
          %v2848 = vsel %vm2825, %v2529, %v2847
          %v2849 = vsel %vm2827, %v2542, %v2848
          %v2850 = vsel %vm2815, %v2561, %v2548
          %v2851 = vsel %vm2817, %v2574, %v2850
          %v2852 = vsel %vm2819, %v2587, %v2851
          %v2853 = vsel %vm2821, %v2600, %v2852
          %v2854 = vsel %vm2823, %v2613, %v2853
          %v2855 = vsel %vm2825, %v2626, %v2854
          %v2856 = vsel %vm2827, %v2639, %v2855
          %v2857 = vsel %vm2815, %v2568, %v2555
          %v2858 = vsel %vm2817, %v2581, %v2857
          %v2859 = vsel %vm2819, %v2594, %v2858
          %v2860 = vsel %vm2821, %v2607, %v2859
          %v2861 = vsel %vm2823, %v2620, %v2860
          %v2862 = vsel %vm2825, %v2633, %v2861
          %v2863 = vsel %vm2827, %v2646, %v2862
          %v2864 = vsel %vm2815, %v2665, %v2652
          %v2865 = vsel %vm2817, %v2678, %v2864
          %v2866 = vsel %vm2819, %v2691, %v2865
          %v2867 = vsel %vm2821, %v2704, %v2866
          %v2868 = vsel %vm2823, %v2717, %v2867
          %v2869 = vsel %vm2825, %v2730, %v2868
          %v2870 = vsel %vm2827, %v2743, %v2869
          %v2871 = vsel %vm2815, %v2672, %v2659
          %v2872 = vsel %vm2817, %v2685, %v2871
          %v2873 = vsel %vm2819, %v2698, %v2872
          %v2874 = vsel %vm2821, %v2711, %v2873
          %v2875 = vsel %vm2823, %v2724, %v2874
          %v2876 = vsel %vm2825, %v2737, %v2875
          %v2877 = vsel %vm2827, %v2750, %v2876
          %v2882 = vsel %vm1618, %v2835, 0
          %v2884 = vsel %vm1618, %v2849, 0
          %v2886 = vsel %vm1618, %v2863, 0
          %v2888 = vsel %vm1618, %v2877, 0
          %2890 = vmatprep.subr.mxu0 0.0
          %2891 = vmatpush1.msra.mxu0 %v1611
          %2892 = vmatprep.subr.mxu0 0.0
          %2893 = vmatpush1.msra.mxu0 %v1610
          %2894 = vmatprep.subr.mxu0 0.0
          %2895 = vmatpush1.msra.mxu0 %v1609
          %2896 = vmatprep.subr.mxu0 0.0
          %2897 = vmatpush1.msra.mxu0 %v1608
          %2898 = vmatprep.subr.mxu0 0.0
          %2899 = vmatpush1.msra.mxu0 %v1607
          %2900 = vmatprep.subr.mxu0 0.0
          %2901 = vmatpush1.msra.mxu0 %v1606
          %2902 = vmatprep.subr.mxu0 0.0
          %2903 = vmatpush1.msra.mxu0 %v1605
          %2904 = vmatprep.subr.mxu0 0.0
          %2905 = vmatpush1.msra.mxu0 %v1604
          %2906 = vmatprep.subr.mxu0 0.0
          %2907 = vmatpush1.msra.mxu0 %v1603
          %2908 = vmatprep.subr.mxu0 0.0
          %2909 = vmatpush1.msra.mxu0 %v1602
          %2910 = vmatprep.subr.mxu0 0.0
          %2911 = vmatpush1.msra.mxu0 %v1601
          %2912 = vmatprep.subr.mxu0 0.0
          %2913 = vmatpush1.msra.mxu0 %v1600
          %2914 = vmatprep.subr.mxu0 0.0
          %2915 = vmatpush1.msra.mxu0 %v1599
          %2916 = vmatprep.subr.mxu0 0.0
          %2917 = vmatpush1.msra.mxu0 %v1598
          %2918 = vmatprep.subr.mxu0 0.0
          %2919 = vmatpush1.msra.mxu0 %v1597
          %2920 = vmatprep.subr.mxu0 0.0
          %2921 = vmatpush1.msra.mxu0 %v1596
          %2922 = vmatprep.subr.mxu0 0.0
          %2923 = vmatpush2.msra.mxu0 0.0
          %2924 = vmatprep.subr.mxu0 0.0
          %2925 = vmatpush2.msra.mxu0 0.0
          %2926 = vmatprep.subr.mxu0 0.0
          %2927 = vmatpush2.msra.mxu0 0.0
          %2928 = vmatprep.subr.mxu0 0.0
          %2929 = vmatpush2.msra.mxu0 0.0
          %2930 = vmatprep.subr.mxu0 0.0
          %2931 = vmatpush2.msra.mxu0 0.0
          %2932 = vmatprep.subr.mxu0 0.0
          %2933 = vmatpush2.msra.mxu0 0.0
          %2934 = vmatprep.subr.mxu0 0.0
          %2935 = vmatpush2.msra.mxu0 0.0
          %2936 = vmatprep.subr.mxu0 0.0
          %2937 = vmatpush2.msra.mxu0 0.0
          %2938 = vmatprep.subr.mxu0 0.0
          %2939 = vmatpush2.msra.mxu0 0.0
          %2940 = vmatprep.subr.mxu0 0.0
          %2941 = vmatpush2.msra.mxu0 0.0
          %2942 = vmatprep.subr.mxu0 0.0
          %2943 = vmatpush2.msra.mxu0 0.0
          %2944 = vmatprep.subr.mxu0 0.0
          %2945 = vmatpush2.msra.mxu0 0.0
          %2946 = vmatprep.subr.mxu0 0.0
          %2947 = vmatpush2.msra.mxu0 %v1615
          %2948 = vmatprep.subr.mxu0 0.0
          %2949 = vmatpush2.msra.mxu0 %v1614
          %2950 = vmatprep.subr.mxu0 0.0
          %2951 = vmatpush2.msra.mxu0 %v1613
          %2952 = vmatprep.subr.mxu0 0.0
          %2953 = vmatpush2.msra.mxu0 %v1612
          %2954 = vmatprep.mubr.f32.mxu0 %v2882
          %2955 = vmatmul.mubr.f32.gmra.mxu0 %v2828
          %v2956 = vpop.f32.mrf.mxu0
          %v2957 = vadd.f32 0.0, %v2956
          %v2958 = vpop.f32.mrf.mxu0
          %2959 = vmatprep.mubr.f32.mxu0 %v2884
          %2960 = vmatmul.mubr.f32.gmra.mxu0 %v2842
          %v2961 = vpop.f32.mrf.mxu0
          %v2962 = vadd.f32 0.0, %v2961
          %v2963 = vpop.f32.mrf.mxu0
          %2964 = vmatprep.mubr.f32.mxu0 %v2886
          %2965 = vmatmul.mubr.f32.gmra.mxu0 %v2856
          %v2966 = vpop.f32.mrf.mxu0
          %v2967 = vadd.f32 0.0, %v2966
          %v2968 = vpop.f32.mrf.mxu0
          %2969 = vmatprep.mubr.f32.mxu0 %v2888
          %2970 = vmatmul.mubr.f32.gmra.mxu0 %v2870
          %v2971 = vpop.f32.mrf.mxu0
          %v2972 = vadd.f32 0.0, %v2971
          %v2973 = vpop.f32.mrf.mxu0
          %2974 = vdwg.mxu0
          %v2975 = vld [vmem:[#allocation3] sm:$0xff]
          %v2976 = vld [vmem:[#allocation3 + $0x8] sm:$0xff]
          %v2977 = vld [vmem:[#allocation3 + $0x10] sm:$0xff]
          %v2978 = vld [vmem:[#allocation3 + $0x18] sm:$0xff]
          %v2979 = vmul.f32 %v2957, 0.5
          %v2980 = vmul.f32 %v2962, 0.5
          %v2981 = vmul.f32 %v2967, 0.5
          %v2982 = vmul.f32 %v2972, 0.5
          %v2983 = vadd.f32 %v2975, %v2979
          %v2984 = vadd.f32 %v2976, %v2980
          %v2985 = vadd.f32 %v2977, %v2981
          %v2986 = vadd.f32 %v2978, %v2982
          %2987 = vst.msk [vmem:[#allocation3] sm:$0xff] %vm1706, %v2983
          %2988 = vst.msk [vmem:[#allocation3 + $0x8] sm:$0xff] %vm1706, %v2984
          %2989 = vst.msk [vmem:[#allocation3 + $0x10] sm:$0xff] %vm1706, %v2985
          %2990 = vst.msk [vmem:[#allocation3 + $0x18] sm:$0xff] %vm1706, %v2986
        $region56: #{tpu_custom_call.1} parent=39 // pred_fallthru
          _
        %p2991 = pnand %p1808, %p244
        %p2992 = pneg %p2991
        // Predicated region
        $region57: #{tpu_custom_call.1} parent=39 // pred_check
          _
        $region58: #{tpu_custom_call.1} parent=39 // pred_check_branch
          %2994 = sbr.rel (%p2991) target = $region60
        $region59: #{tpu_custom_call.1} parent=39 // pred_region
          %v2995 = vld [vmem:[#allocation2] sm:$0xff]
          %v2996 = vld [vmem:[#allocation2 + $0x8] sm:$0xff]
          %v2997 = vld [vmem:[#allocation2 + $0x10] sm:$0xff]
          %v2998 = vld [vmem:[#allocation2 + $0x18] sm:$0xff]
          %v2999 = vld [vmem:[#allocation3] sm:$0xff]
          %v3000 = vld [vmem:[#allocation3 + $0x8] sm:$0xff]
          %v3001 = vld [vmem:[#allocation3 + $0x10] sm:$0xff]
          %v3002 = vld [vmem:[#allocation3 + $0x18] sm:$0xff]
          %v3003 = vadd.f32 %v2995, %v2999
          %v3004 = vadd.f32 %v2996, %v3000
          %v3005 = vadd.f32 %v2997, %v3001
          %v3006 = vadd.f32 %v2998, %v3002
          %3007 = vst.msk [vmem:[#allocation2] sm:$0xff] %vm1706, %v3003
          %3008 = vst.msk [vmem:[#allocation2 + $0x8] sm:$0xff] %vm1706, %v3004
          %3009 = vst.msk [vmem:[#allocation2 + $0x10] sm:$0xff] %vm1706, %v3005
          %3010 = vst.msk [vmem:[#allocation2 + $0x18] sm:$0xff] %vm1706, %v3006
          %3011 = vst.msk [vmem:[#allocation3] sm:$0xff] %vm1706, 0.0
          %3012 = vst.msk [vmem:[#allocation3 + $0x8] sm:$0xff] %vm1706, 0.0
          %3013 = vst.msk [vmem:[#allocation3 + $0x10] sm:$0xff] %vm1706, 0.0
          %3014 = vst.msk [vmem:[#allocation3 + $0x18] sm:$0xff] %vm1706, 0.0
        $region60: #{tpu_custom_call.1} parent=39 // pred_fallthru
          _
        // Predicated region
        $region61: #{tpu_custom_call.1} parent=39 // pred_check
          %p3015 = pneg %p162
        $region62: #{tpu_custom_call.1} parent=39 // pred_check_branch
          %3017 = sbr.rel (%p3015) target = $region64
        $region63: #{tpu_custom_call.1} parent=39 // pred_region
          %s3019 = ssub.s32 64, 64
          %3020 = vsyncadd [#allocation6], %s3019
          %s3021 = smul.addr %s22, 2
          %s3022 = smul.addr %s3021, 32
          %s3023 = scalar_lea.hbm %s5, %s3022
          %s3025 = sshll.u32 [#allocation5], 4
          %s3026 = int_to_ptr.vmem [resolvable:$true] %s3025
          %3028 = dma.vmem_to_hbm [thread:$0]  %s3026, 64, %s3023, [#allocation6]
        $region64: #{tpu_custom_call.1} parent=39 // pred_fallthru
          _
        // Predicated region
        $region65: #{tpu_custom_call.1} parent=39 // pred_check
          %p3029 = pneg %p162
        $region66: #{tpu_custom_call.1} parent=39 // pred_check_branch
          %3031 = sbr.rel (%p3029) target = $region68
        $region67: #{tpu_custom_call.1} parent=39 // pred_region
          %3032 = dma.done [#allocation6], 64
        $region68: #{tpu_custom_call.1} parent=39 // pred_fallthru
          _
      $region40: #{tpu_custom_call.1} parent=5 // pred_fallthru
        _
      %p3033 = scmp.le.s32.totalorder 2, %s12
      // Predicated region
      $region69: #{tpu_custom_call.1} parent=5 // pred_check
        %p3034 = pneg %p3033
      $region70: #{tpu_custom_call.1} parent=5 // pred_check_branch
        %3036 = sbr.rel (%p3034) target = $region72
      $region71: #{tpu_custom_call.1} parent=5 // pred_region
        %s3037 = ssub.s32 %s12, 2
      $region72: #{tpu_custom_call.1} parent=5 // pred_fallthru
        _
    $region6: #{tpu_custom_call.1} parent=1 // loop_footer
      %s16 = sadd.s32 1, %s12
    $region7: #{tpu_custom_call.1} parent=1 // loop_footer_branch
      %11 = sbr.rel target = $region3
    $region8: #{tpu_custom_call.1} parent=1 // loop_exit
      _
    %3038 = vsyncpa [#allocation6], 1
    %s3039 = scalar_lea.sflag [#allocation6], 1
    %3040 = vsyncpa %s3039, 1

</llo_original>
